<compile_context>
chip_gen: v7x
topology: tpu7x:2x2x1
jax: 0.10.0
libtpu: 0.0.40
codegen_flags: <defaults>
</compile_context>

<pallas_src>
import functools

import numpy as np
import jax
import jax.numpy as jnp
from jax.experimental import pallas as pl
from jax.experimental.pallas import tpu as pltpu


def _round_up(x, m):
    return ((x + m - 1) // m) * m


# ----------------------------------------------------------------------------
# Pallas kernel: one (Tp, tn) block of the *transposed* HOI matching cost.
#   sublane axis = targets (Tp = round_up(T, 8), resident, untiled)
#   lane axis    = predictions (tiled along a 1-D parallel grid)
# ----------------------------------------------------------------------------
def _hoi_cost_kernel(obj_logits_ref,   # (C_pad, tn)  object logits^T (pad rows = -1e9)
                     verb_logits_ref,  # (V, tn)      verb logits^T
                     sub_boxes_ref,    # (4, tn)      pred subject boxes^T (cxcywh)
                     obj_boxes_ref,    # (4, tn)      pred object boxes^T (cxcywh)
                     tgt_mat_ref,      # (Tp, C_pad+V) [w_obj*onehot | a*verb_labels]
                     tgt_sub_ref,      # (Tp, 4)      target subject boxes (cxcywh)
                     tgt_obj_ref,      # (Tp, 4)      target object boxes (cxcywh)
                     tgt_aux_ref,      # (Tp, 3)      [verb_const, verb_rowsum_mul, obj_valid]
                     c_ref,            # (Tp, tn)     output: transposed cost tile
                     *, w_bbox, w_giou, no_obj):
    f32 = jnp.float32

    # ---- per-prediction class probabilities (computed once per N tile) ------
    logits = obj_logits_ref[...].astype(f32)                          # (C_pad, tn)
    m = jnp.max(logits, axis=0, keepdims=True)                        # (1, tn)
    e = jnp.exp(logits - m)
    inv_s = 1.0 / jnp.sum(e, axis=0, keepdims=True)                   # exact, tiny
    prob = e * inv_s                                                  # softmax

    if no_obj:
        obj_block = -prob                                             # -> -prob[label]
    else:
        alpha = 0.25                                                  # gamma == 2
        pos = alpha * jnp.square(1.0 - prob) * (-jnp.log(prob + 1e-8))
        neg = (1.0 - alpha) * jnp.square(prob) * (-jnp.log(1.0 - prob + 1e-8))
        obj_block = pos - neg                                         # (C_pad, tn)

    # sigmoid(x) == 0.5*(tanh(x/2)+1): one EUP op, no per-element divide.
    vprob = 0.5 * (jnp.tanh(0.5 * verb_logits_ref[...].astype(f32)) + 1.0)   # (V, tn)
    rowsum_p = jnp.sum(vprob, axis=0, keepdims=True)                  # (1, tn)

    # ---- fused MXU matmul: w_obj*cost_obj_class + a_t * (L . p) -------------
    pred_block = jnp.concatenate([obj_block, vprob], axis=0)          # (C_pad+V, tn)
    c = jnp.dot(tgt_mat_ref[...].astype(f32), pred_block,
                preferred_element_type=f32)                           # (Tp, tn)

    aux = tgt_aux_ref[...].astype(f32)
    verb_const = aux[:, 0:1]                                          # (Tp, 1)
    verb_rmul = aux[:, 1:2]
    obj_valid = aux[:, 2:3]
    # remaining verb-class terms: per-target constant + rank-1 multiply-add
    c = c + verb_const + verb_rmul * rowsum_p

    # ---- box L1 (cdist p=1) ---------------------------------------------------
    psub = sub_boxes_ref[...].astype(f32)                             # (4, tn)
    pobj = obj_boxes_ref[...].astype(f32)
    tsub = tgt_sub_ref[...].astype(f32)                               # (Tp, 4)
    tobj = tgt_obj_ref[...].astype(f32)

    def l1_cdist(tb, pb):                                             # -> (Tp, tn)
        acc = jnp.abs(tb[:, 0:1] - pb[0:1, :])
        for k in range(1, 4):
            acc = acc + jnp.abs(tb[:, k:k + 1] - pb[k:k + 1, :])
        return acc

    cost_bbox = jnp.maximum(l1_cdist(tsub, psub),
                            l1_cdist(tobj, pobj) * obj_valid)
    c = c + w_bbox * cost_bbox

    # ---- pairwise generalized IoU ---------------------------------------------
    def neg_giou(tb, pb):
        # Target corners are (Tp,1) columns, prediction corners (1,tn) rows.
        # Never materialize full-tile corners; broadcast at the point of use,
        # and compute each pairwise min/max exactly once.
        tcx, tcy, tw, th = tb[:, 0:1], tb[:, 1:2], tb[:, 2:3], tb[:, 3:4]
        pcx, pcy, pw, ph = pb[0:1, :], pb[1:2, :], pb[2:3, :], pb[3:4, :]
        tx0, tx1 = tcx - 0.5 * tw, tcx + 0.5 * tw
        ty0, ty1 = tcy - 0.5 * th, tcy + 0.5 * th
        px0, px1 = pcx - 0.5 * pw, pcx + 0.5 * pw
        py0, py1 = pcy - 0.5 * ph, pcy + 0.5 * ph
        area_t = tw * th                                              # (Tp, 1)
        area_p = pw * ph                                              # (1, tn)
        iw = jnp.maximum(jnp.minimum(tx1, px1) - jnp.maximum(tx0, px0), 0.0)
        ih = jnp.maximum(jnp.minimum(ty1, py1) - jnp.maximum(ty0, py0), 0.0)
        inter = iw * ih
        union = (area_t + area_p) - inter
        cw = jnp.maximum(tx1, px1) - jnp.minimum(tx0, px0)
        ch = jnp.maximum(ty1, py1) - jnp.minimum(ty0, py0)
        area_c = cw * ch
        # EUP approx reciprocals replace VALU divides; 1e-9 only protects the
        # padded 0/0 corner (sliced off by the wrapper).
        inv_union = pl.reciprocal(union + 1e-9, approx=True)
        inv_c = pl.reciprocal(area_c + 1e-9, approx=True)
        return (area_c - union) * inv_c - inter * inv_union           # = -GIoU

    cost_sub_giou = neg_giou(tsub, psub)
    cost_obj_giou = neg_giou(tobj, pobj) + cost_sub_giou * (1.0 - obj_valid)
    c = c + w_giou * jnp.maximum(cost_sub_giou, cost_obj_giou)

    c_ref[...] = c.astype(c_ref.dtype)


# ----------------------------------------------------------------------------
# Jitted wrapper: layout plumbing (transpose/pad/one-hot/aux) + pallas_call.
# ----------------------------------------------------------------------------
@functools.partial(jax.jit, static_argnames=("w_obj", "w_verb", "w_bbox",
                                             "w_giou", "no_obj", "tile_n"))
def _hoi_cost_matrix_jit(pred_obj_logits, pred_verb_logits,
                         pred_sub_boxes, pred_obj_boxes,
                         tgt_obj_labels, tgt_verb_labels,
                         tgt_sub_boxes, tgt_obj_boxes,
                         *, w_obj, w_verb, w_bbox, w_giou, no_obj, tile_n):
    f32 = jnp.float32
    bs, Q, C = pred_obj_logits.shape
    V = pred_verb_logits.shape[-1]
    N = bs * Q
    T = int(tgt_obj_labels.shape[0])

    C_pad = _round_up(C, 8)        # sublane-aligned so the in-kernel concat is tile-aligned
    Tp = _round_up(max(T, 1), 8)   # targets live on sublanes: pad to 8, not 128
    Np = _round_up(N, 128)         # predictions live on lanes: pad to 128

    # Lane-axis tile: largest multiple of 128 dividing Np that is <= tile_n,
    # keeps the output block <~4 MiB, and (when possible) leaves >= 2 parallel
    # grid steps so both v7x TensorCores get work.
    kk = Np // 128
    vmem_cap = max(1, ((4 << 20) // (4 * Tp)) // 128)
    tmax = max(1, min(_round_up(int(tile_n), 128) // 128, kk, vmem_cap))
    best = 1
    for d in range(1, kk + 1):
        if kk % d != 0 or d > tmax:
            continue
        if kk >= 2 and kk // d < 2:
            continue
        best = d
    tn = best * 128
    grid = (Np // tn,)

    # ---- prediction-side arrays: feature on sublanes, N on lanes --------------
    # Native dtype is kept (kernel casts to f32).  The -1e9 fill makes padded
    # class rows contribute ~zero probability for real predictions.
    obj_logits_t = jnp.pad(pred_obj_logits.reshape(N, C).T,
                           ((0, C_pad - C), (0, Np - N)), constant_values=-1e9)
    verb_logits_t = jnp.pad(pred_verb_logits.reshape(N, V).T, ((0, 0), (0, Np - N)))
    sub_boxes_t = jnp.pad(pred_sub_boxes.reshape(N, 4).T, ((0, 0), (0, Np - N)))
    obj_boxes_t = jnp.pad(pred_obj_boxes.reshape(N, 4).T, ((0, 0), (0, Np - N)))

    # ---- target-side arrays: T on sublanes (tiny, resident, untiled) ----------
    L = tgt_verb_labels.astype(f32)                                   # (T, V)
    cs = jnp.sum(L, axis=1, keepdims=True)                            # (T, 1)
    inv_pos_den = 1.0 / (cs + 1e-4)
    inv_neg_den = 1.0 / ((float(V) - cs) + 1e-4)
    a_col = (-0.5 * float(w_verb)) * (inv_pos_den + inv_neg_den)      # folded into L
    verb_const = (-0.5 * float(w_verb)) * (float(V) - cs) * inv_neg_den
    verb_rmul = (0.5 * float(w_verb)) * inv_neg_den
    obj_valid = jnp.any(tgt_obj_boxes != 0, axis=1, keepdims=True).astype(f32)

    onehot = jax.nn.one_hot(tgt_obj_labels, C_pad, dtype=f32)         # (T, C_pad)
    tgt_mat = jnp.concatenate([float(w_obj) * onehot, a_col * L], axis=1)
    tgt_aux = jnp.concatenate([verb_const, verb_rmul, obj_valid], axis=1)

    pad_t = ((0, Tp - T), (0, 0))
    tgt_mat = jnp.pad(tgt_mat, pad_t)
    tgt_aux = jnp.pad(tgt_aux, pad_t)
    tgt_sub = jnp.pad(tgt_sub_boxes.astype(f32), pad_t)
    tgt_obj = jnp.pad(tgt_obj_boxes.astype(f32), pad_t)

    kernel = functools.partial(_hoi_cost_kernel, w_bbox=float(w_bbox),
                               w_giou=float(w_giou), no_obj=bool(no_obj))

    def pred_spec(feat):     # tiled along the lane (prediction) axis only
        return pl.BlockSpec((feat, tn), lambda i: (0, i))

    def tgt_spec(shape):     # full resident block, never re-fetched
        return pl.BlockSpec(shape, lambda i: (0, 0))

    c_t = pl.pallas_call(
        kernel,
        out_shape=jax.ShapeDtypeStruct((Tp, Np), f32),
        grid=grid,
        in_specs=[pred_spec(C_pad), pred_spec(V), pred_spec(4), pred_spec(4),
                  tgt_spec((Tp, C_pad + V)), tgt_spec((Tp, 4)),
                  tgt_spec((Tp, 4)), tgt_spec((Tp, 3))],
        out_specs=pl.BlockSpec((Tp, tn), lambda i: (0, i)),
        compiler_params=pltpu.CompilerParams(dimension_semantics=("parallel",)),
    )(obj_logits_t, verb_logits_t, sub_boxes_t, obj_boxes_t,
      tgt_mat, tgt_sub, tgt_obj, tgt_aux)

    # Slice off padding and un-transpose on device; only the useful slab moves.
    return c_t[:T, :N].T.reshape(bs, Q, T)


def compute_hoi_cost_matrix(pred_obj_logits, pred_verb_logits,
                            pred_sub_boxes, pred_obj_boxes,
                            tgt_obj_labels, tgt_verb_labels,
                            tgt_sub_boxes, tgt_obj_boxes,
                            *, w_obj=1.0, w_verb=1.0, w_bbox=1.0, w_giou=1.0,
                            no_obj=False, tile_n=512):
    bs, Q = pred_obj_logits.shape[:2]
    if int(tgt_obj_labels.shape[0]) == 0:
        return jnp.zeros((bs, Q, 0), jnp.float32)
    return _hoi_cost_matrix_jit(
        pred_obj_logits, pred_verb_logits, pred_sub_boxes, pred_obj_boxes,
        tgt_obj_labels, tgt_verb_labels, tgt_sub_boxes, tgt_obj_boxes,
        w_obj=float(w_obj), w_verb=float(w_verb), w_bbox=float(w_bbox),
        w_giou=float(w_giou), no_obj=bool(no_obj), tile_n=int(tile_n))


# ----------------------------------------------------------------------------
# Host-side Hungarian assignment (no clean Pallas equivalent).
# ----------------------------------------------------------------------------
def _lsa_fallback(cost):
    """Pure-numpy Jonker/Hungarian (shortest augmenting paths), scipy-compatible."""
    a = np.asarray(cost, dtype=np.float64)
    transposed = a.shape[0] > a.shape[1]
    if transposed:
        a = a.T
    n, m = a.shape                         # n <= m
    u = np.zeros(n + 1)
    v = np.zeros(m + 1)
    p = np.zeros(m + 1, dtype=np.int64)    # p[j] = row assigned to column j
    way = np.zeros(m + 1, dtype=np.int64)
    for i in range(1, n + 1):
        p[0] = i
        j0 = 0
        minv = np.full(m + 1, np.inf)
        used = np.zeros(m + 1, dtype=bool)
        while True:
            used[j0] = True
            i0 = p[j0]
            delta = np.inf
            j1 = 0
            for j in range(1, m + 1):
                if not used[j]:
                    cur = a[i0 - 1, j - 1] - u[i0] - v[j]
                    if cur < minv[j]:
                        minv[j] = cur
                        way[j] = j0
                    if minv[j] < delta:
                        delta = minv[j]
                        j1 = j
            for j in range(m + 1):
                if used[j]:
                    u[p[j]] += delta
                    v[j] -= delta
                else:
                    minv[j] -= delta
            j0 = j1
            if p[j0] == 0:
                break
        while j0 != 0:
            j1 = way[j0]
            p[j0] = p[j1]
            j0 = j1
    rows, cols = [], []
    for j in range(1, m + 1):
        if p[j] != 0:
            rows.append(p[j] - 1)
            cols.append(j - 1)
    rows = np.asarray(rows, dtype=np.int64)
    cols = np.asarray(cols, dtype=np.int64)
    if transposed:
        rows, cols = cols, rows
    order = np.argsort(rows)
    return rows[order], cols[order]


def _linear_sum_assignment(cost):
    # TODO(synk): Hungarian matching is a sequential combinatorial algorithm;
    # it runs on the host (scipy when available, pure-numpy JV fallback otherwise).
    try:
        from scipy.optimize import linear_sum_assignment as lsa
        r, c = lsa(cost)
        return np.asarray(r, dtype=np.int64), np.asarray(c, dtype=np.int64)
    except Exception:
        return _lsa_fallback(cost)


class HungarianMatcherHOI:
    def __init__(self, cost_obj_class=1.0, cost_verb_class=1.0,
                 cost_bbox=1.0, cost_giou=1.0, no_obj=False):
        assert cost_obj_class != 0 or cost_verb_class != 0 or cost_bbox != 0 or cost_giou != 0
        self.cost_obj_class = cost_obj_class
        self.cost_verb_class = cost_verb_class
        self.cost_bbox = cost_bbox
        self.cost_giou = cost_giou
        self.no_obj = no_obj

    def forward(self, outputs, targets):
        bs, num_queries = outputs['pred_obj_logits'].shape[:2]
        tgt_obj_labels = jnp.concatenate([v['obj_labels'] for v in targets])
        tgt_verb_labels = jnp.concatenate([v['verb_labels'] for v in targets])
        tgt_sub_boxes = jnp.concatenate([v['sub_boxes'] for v in targets])
        tgt_obj_boxes = jnp.concatenate([v['obj_boxes'] for v in targets])

        C = compute_hoi_cost_matrix(
            outputs['pred_obj_logits'], outputs['pred_verb_logits'],
            outputs['pred_sub_boxes'], outputs['pred_obj_boxes'],
            tgt_obj_labels, tgt_verb_labels, tgt_sub_boxes, tgt_obj_boxes,
            w_obj=self.cost_obj_class, w_verb=self.cost_verb_class,
            w_bbox=self.cost_bbox, w_giou=self.cost_giou, no_obj=self.no_obj)
        C_np = np.asarray(jax.block_until_ready(C))

        sizes = [int(v['obj_labels'].shape[0]) for v in targets]
        indices = []
        start = 0
        for i, sz in enumerate(sizes):
            if sz == 0:
                indices.append((np.zeros((0,), np.int64), np.zeros((0,), np.int64)))
            else:
                indices.append(_linear_sum_assignment(C_np[i, :, start:start + sz]))
            start += sz
        return indices

    __call__ = forward


# ----------------------------------------------------------------------------
# Demo
# ----------------------------------------------------------------------------
if __name__ == "__main__":
    key = jax.random.PRNGKey(0)
    bs, num_queries = 2, 256           # N = 512 -> 2 x 256-wide parallel grid steps
    n_obj_cls, n_verb_cls = 12, 10
    sizes = [3, 4]

    ks = jax.random.split(key, 8)
    outputs = {
        'pred_obj_logits': jax.random.normal(ks[0], (bs, num_queries, n_obj_cls), jnp.float32),
        'pred_verb_logits': jax.random.normal(ks[1], (bs, num_queries, n_verb_cls), jnp.float32),
        'pred_sub_boxes': jax.random.uniform(ks[2], (bs, num_queries, 4), jnp.float32,
                                             minval=0.05, maxval=0.95),
        'pred_obj_boxes': jax.random.uniform(ks[3], (bs, num_queries, 4), jnp.float32,
                                             minval=0.05, maxval=0.95),
    }

    targets = []
    for b in range(bs):
        t = sizes[b]
        tk = jax.random.split(ks[4 + b], 4)
        targets.append({
            'obj_labels': jax.random.randint(tk[0], (t,), 0, n_obj_cls),
            'verb_labels': jax.random.bernoulli(tk[1], 0.3, (t, n_verb_cls)).astype(jnp.float32),
            'sub_boxes': jax.random.uniform(tk[2], (t, 4), jnp.float32, minval=0.05, maxval=0.95),
            'obj_boxes': jax.random.uniform(tk[3], (t, 4), jnp.float32, minval=0.05, maxval=0.95),
        })

    matcher = HungarianMatcherHOI(cost_obj_class=1.0, cost_verb_class=1.0,
                                  cost_bbox=2.5, cost_giou=1.0)
    indices = matcher(outputs, targets)

    # sanity: one matching per image, sizes match
    assert len(indices) == bs
    for (ri, ci), sz in zip(indices, sizes):
        assert ri.shape == (sz,) and ci.shape == (sz,)

    # consistency across lane tilings (exercises multi-block grid paths)
    cat = lambda k: jnp.concatenate([t[k] for t in targets])
    args = (outputs['pred_obj_logits'], outputs['pred_verb_logits'],
            outputs['pred_sub_boxes'], outputs['pred_obj_boxes'],
            cat('obj_labels'), cat('verb_labels'), cat('sub_boxes'), cat('obj_boxes'))
    c_default = compute_hoi_cost_matrix(*args, w_obj=1.0, w_verb=1.0, w_bbox=2.5, w_giou=1.0)
    c_small = compute_hoi_cost_matrix(*args, w_obj=1.0, w_verb=1.0, w_bbox=2.5, w_giou=1.0,
                                      tile_n=128)
    c_default, c_small = jax.block_until_ready((c_default, c_small))
    assert bool(jnp.all(jnp.isfinite(c_default)))
    assert bool(jnp.allclose(c_default, c_small, rtol=1e-4, atol=1e-4))

    print("KERNEL_OK")
</pallas_src>

<mosaic_0001>
module attributes {stable_mosaic.version = 11 : i64} {
  func.func @_hoi_cost_kernel(%arg0: i32, %arg1: memref<16x256xf32, #tpu.memory_space<vmem>>, %arg2: memref<10x256xf32, #tpu.memory_space<vmem>>, %arg3: memref<4x256xf32, #tpu.memory_space<vmem>>, %arg4: memref<4x256xf32, #tpu.memory_space<vmem>>, %arg5: memref<8x26xf32, #tpu.memory_space<vmem>>, %arg6: memref<8x4xf32, #tpu.memory_space<vmem>>, %arg7: memref<8x4xf32, #tpu.memory_space<vmem>>, %arg8: memref<8x3xf32, #tpu.memory_space<vmem>>, %arg9: memref<8x256xf32, #tpu.memory_space<vmem>>) attributes {dimension_semantics = [#tpu.dimension_semantics<parallel>], iteration_bounds = array<i64: 2>, scalar_prefetch = 0 : i64, scratch_operands = 0 : i64, tpu.core_type = #tpu.core_type<tc>, window_params = [{transform_indices = @transform_0, window_bounds = array<i64: 16, 256>}, {transform_indices = @transform_1, window_bounds = array<i64: 10, 256>}, {transform_indices = @transform_2, window_bounds = array<i64: 4, 256>}, {transform_indices = @transform_3, window_bounds = array<i64: 4, 256>}, {pipeline_mode = #tpu.pipeline_mode<synchronous>, transform_indices = @transform_4, window_bounds = array<i64: 8, 26>}, {pipeline_mode = #tpu.pipeline_mode<synchronous>, transform_indices = @transform_5, window_bounds = array<i64: 8, 4>}, {pipeline_mode = #tpu.pipeline_mode<synchronous>, transform_indices = @transform_6, window_bounds = array<i64: 8, 4>}, {pipeline_mode = #tpu.pipeline_mode<synchronous>, transform_indices = @transform_7, window_bounds = array<i64: 8, 3>}, {transform_indices = @transform_8, window_bounds = array<i64: 8, 256>}]} {
    %c0 = arith.constant 0 : index
    %c0_0 = arith.constant 0 : index
    %0 = vector.load %arg1[%c0, %c0_0] : memref<16x256xf32, #tpu.memory_space<vmem>>, vector<16x256xf32>
    %cst = arith.constant dense<0xFF800000> : vector<256xf32>
    %1 = vector.multi_reduction <maximumf>, %0, %cst [0] : vector<16x256xf32> to vector<256xf32>
    %2 = vector.shape_cast %1 : vector<256xf32> to vector<1x256xf32>
    %3 = vector.broadcast %2 : vector<1x256xf32> to vector<16x256xf32>
    %4 = arith.subf %0, %3 : vector<16x256xf32>
    %5 = math.exp %4 : vector<16x256xf32>
    %cst_1 = arith.constant dense<0.000000e+00> : vector<256xf32>
    %6 = vector.multi_reduction <add>, %5, %cst_1 [0] : vector<16x256xf32> to vector<256xf32>
    %7 = vector.shape_cast %6 : vector<256xf32> to vector<1x256xf32>
    %cst_2 = arith.constant 1.000000e+00 : f32
    %8 = vector.broadcast %cst_2 : f32 to vector<1x256xf32>
    %9 = arith.divf %8, %7 : vector<1x256xf32>
    %10 = vector.broadcast %9 : vector<1x256xf32> to vector<16x256xf32>
    %11 = arith.mulf %5, %10 : vector<16x256xf32>
    %cst_3 = arith.constant 1.000000e+00 : f32
    %12 = vector.broadcast %cst_3 : f32 to vector<16x256xf32>
    %13 = arith.subf %12, %11 : vector<16x256xf32>
    %14 = arith.mulf %13, %13 : vector<16x256xf32>
    %cst_4 = arith.constant 2.500000e-01 : f32
    %15 = vector.broadcast %cst_4 : f32 to vector<16x256xf32>
    %16 = arith.mulf %15, %14 : vector<16x256xf32>
    %cst_5 = arith.constant 9.99999993E-9 : f32
    %17 = vector.broadcast %cst_5 : f32 to vector<16x256xf32>
    %18 = arith.addf %11, %17 : vector<16x256xf32>
    %19 = math.log %18 : vector<16x256xf32>
    %cst_6 = arith.constant 0.000000e+00 : f32
    %20 = vector.broadcast %cst_6 : f32 to vector<16x256xf32>
    %21 = arith.subf %20, %19 : vector<16x256xf32>
    %22 = arith.mulf %16, %21 : vector<16x256xf32>
    %23 = arith.mulf %11, %11 : vector<16x256xf32>
    %cst_7 = arith.constant 7.500000e-01 : f32
    %24 = vector.broadcast %cst_7 : f32 to vector<16x256xf32>
    %25 = arith.mulf %24, %23 : vector<16x256xf32>
    %cst_8 = arith.constant 1.000000e+00 : f32
    %26 = vector.broadcast %cst_8 : f32 to vector<16x256xf32>
    %27 = arith.subf %26, %11 : vector<16x256xf32>
    %cst_9 = arith.constant 9.99999993E-9 : f32
    %28 = vector.broadcast %cst_9 : f32 to vector<16x256xf32>
    %29 = arith.addf %27, %28 : vector<16x256xf32>
    %30 = math.log %29 : vector<16x256xf32>
    %cst_10 = arith.constant 0.000000e+00 : f32
    %31 = vector.broadcast %cst_10 : f32 to vector<16x256xf32>
    %32 = arith.subf %31, %30 : vector<16x256xf32>
    %33 = arith.mulf %25, %32 : vector<16x256xf32>
    %34 = arith.subf %22, %33 : vector<16x256xf32>
    %c0_11 = arith.constant 0 : index
    %c0_12 = arith.constant 0 : index
    %35 = vector.load %arg2[%c0_11, %c0_12] : memref<10x256xf32, #tpu.memory_space<vmem>>, vector<10x256xf32>
    %cst_13 = arith.constant 5.000000e-01 : f32
    %36 = vector.broadcast %cst_13 : f32 to vector<10x256xf32>
    %37 = arith.mulf %36, %35 : vector<10x256xf32>
    %38 = math.tanh %37 : vector<10x256xf32>
    %cst_14 = arith.constant 1.000000e+00 : f32
    %39 = vector.broadcast %cst_14 : f32 to vector<10x256xf32>
    %40 = arith.addf %38, %39 : vector<10x256xf32>
    %cst_15 = arith.constant 5.000000e-01 : f32
    %41 = vector.broadcast %cst_15 : f32 to vector<10x256xf32>
    %42 = arith.mulf %41, %40 : vector<10x256xf32>
    %cst_16 = arith.constant dense<0.000000e+00> : vector<256xf32>
    %43 = vector.multi_reduction <add>, %42, %cst_16 [0] : vector<10x256xf32> to vector<256xf32>
    %44 = vector.shape_cast %43 : vector<256xf32> to vector<1x256xf32>
    %45 = tpu.concatenate %34, %42 in 0 : vector<16x256xf32>, vector<10x256xf32> -> vector<26x256xf32>
    %c0_17 = arith.constant 0 : index
    %c0_18 = arith.constant 0 : index
    %46 = vector.load %arg5[%c0_17, %c0_18] : memref<8x26xf32, #tpu.memory_space<vmem>>, vector<8x26xf32>
    %cst_19 = arith.constant dense<0.000000e+00> : vector<8x256xf32>
    %47 = tpu.matmul %46, %45, %cst_19 {dimension_numbers = #tpu.dot_dimension_numbers<[1], [0], [0], [1], [0, 0, 1, 1], [], []>} : vector<8x26xf32>, vector<26x256xf32>, vector<8x256xf32> -> vector<8x256xf32>
    %c0_20 = arith.constant 0 : index
    %c0_21 = arith.constant 0 : index
    %48 = vector.load %arg8[%c0_20, %c0_21] : memref<8x3xf32, #tpu.memory_space<vmem>>, vector<8x3xf32>
    %49 = vector.extract_strided_slice %48 {offsets = [0, 0], sizes = [8, 1], strides = [1, 1]} : vector<8x3xf32> to vector<8x1xf32>
    %50 = vector.extract_strided_slice %48 {offsets = [0, 1], sizes = [8, 1], strides = [1, 1]} : vector<8x3xf32> to vector<8x1xf32>
    %51 = vector.extract_strided_slice %48 {offsets = [0, 2], sizes = [8, 1], strides = [1, 1]} : vector<8x3xf32> to vector<8x1xf32>
    %52 = vector.broadcast %49 : vector<8x1xf32> to vector<8x256xf32>
    %53 = arith.addf %47, %52 : vector<8x256xf32>
    %54 = vector.broadcast %50 : vector<8x1xf32> to vector<8x256xf32>
    %55 = vector.broadcast %44 : vector<1x256xf32> to vector<8x256xf32>
    %56 = arith.mulf %54, %55 : vector<8x256xf32>
    %57 = arith.addf %53, %56 : vector<8x256xf32>
    %c0_22 = arith.constant 0 : index
    %c0_23 = arith.constant 0 : index
    %58 = vector.load %arg3[%c0_22, %c0_23] : memref<4x256xf32, #tpu.memory_space<vmem>>, vector<4x256xf32>
    %c0_24 = arith.constant 0 : index
    %c0_25 = arith.constant 0 : index
    %59 = vector.load %arg4[%c0_24, %c0_25] : memref<4x256xf32, #tpu.memory_space<vmem>>, vector<4x256xf32>
    %c0_26 = arith.constant 0 : index
    %c0_27 = arith.constant 0 : index
    %60 = vector.load %arg6[%c0_26, %c0_27] : memref<8x4xf32, #tpu.memory_space<vmem>>, vector<8x4xf32>
    %c0_28 = arith.constant 0 : index
    %c0_29 = arith.constant 0 : index
    %61 = vector.load %arg7[%c0_28, %c0_29] : memref<8x4xf32, #tpu.memory_space<vmem>>, vector<8x4xf32>
    %62 = vector.extract_strided_slice %60 {offsets = [0, 0], sizes = [8, 1], strides = [1, 1]} : vector<8x4xf32> to vector<8x1xf32>
    %63 = vector.extract_strided_slice %58 {offsets = [0, 0], sizes = [1, 256], strides = [1, 1]} : vector<4x256xf32> to vector<1x256xf32>
    %64 = vector.broadcast %62 : vector<8x1xf32> to vector<8x256xf32>
    %65 = vector.broadcast %63 : vector<1x256xf32> to vector<8x256xf32>
    %66 = arith.subf %64, %65 : vector<8x256xf32>
    %67 = math.absf %66 : vector<8x256xf32>
    %68 = vector.extract_strided_slice %60 {offsets = [0, 1], sizes = [8, 1], strides = [1, 1]} : vector<8x4xf32> to vector<8x1xf32>
    %69 = vector.extract_strided_slice %58 {offsets = [1, 0], sizes = [1, 256], strides = [1, 1]} : vector<4x256xf32> to vector<1x256xf32>
    %70 = vector.broadcast %68 : vector<8x1xf32> to vector<8x256xf32>
    %71 = vector.broadcast %69 : vector<1x256xf32> to vector<8x256xf32>
    %72 = arith.subf %70, %71 : vector<8x256xf32>
    %73 = math.absf %72 : vector<8x256xf32>
    %74 = arith.addf %67, %73 : vector<8x256xf32>
    %75 = vector.extract_strided_slice %60 {offsets = [0, 2], sizes = [8, 1], strides = [1, 1]} : vector<8x4xf32> to vector<8x1xf32>
    %76 = vector.extract_strided_slice %58 {offsets = [2, 0], sizes = [1, 256], strides = [1, 1]} : vector<4x256xf32> to vector<1x256xf32>
    %77 = vector.broadcast %75 : vector<8x1xf32> to vector<8x256xf32>
    %78 = vector.broadcast %76 : vector<1x256xf32> to vector<8x256xf32>
    %79 = arith.subf %77, %78 : vector<8x256xf32>
    %80 = math.absf %79 : vector<8x256xf32>
    %81 = arith.addf %74, %80 : vector<8x256xf32>
    %82 = vector.extract_strided_slice %60 {offsets = [0, 3], sizes = [8, 1], strides = [1, 1]} : vector<8x4xf32> to vector<8x1xf32>
    %83 = vector.extract_strided_slice %58 {offsets = [3, 0], sizes = [1, 256], strides = [1, 1]} : vector<4x256xf32> to vector<1x256xf32>
    %84 = vector.broadcast %82 : vector<8x1xf32> to vector<8x256xf32>
    %85 = vector.broadcast %83 : vector<1x256xf32> to vector<8x256xf32>
    %86 = arith.subf %84, %85 : vector<8x256xf32>
    %87 = math.absf %86 : vector<8x256xf32>
    %88 = arith.addf %81, %87 : vector<8x256xf32>
    %89 = vector.extract_strided_slice %61 {offsets = [0, 0], sizes = [8, 1], strides = [1, 1]} : vector<8x4xf32> to vector<8x1xf32>
    %90 = vector.extract_strided_slice %59 {offsets = [0, 0], sizes = [1, 256], strides = [1, 1]} : vector<4x256xf32> to vector<1x256xf32>
    %91 = vector.broadcast %89 : vector<8x1xf32> to vector<8x256xf32>
    %92 = vector.broadcast %90 : vector<1x256xf32> to vector<8x256xf32>
    %93 = arith.subf %91, %92 : vector<8x256xf32>
    %94 = math.absf %93 : vector<8x256xf32>
    %95 = vector.extract_strided_slice %61 {offsets = [0, 1], sizes = [8, 1], strides = [1, 1]} : vector<8x4xf32> to vector<8x1xf32>
    %96 = vector.extract_strided_slice %59 {offsets = [1, 0], sizes = [1, 256], strides = [1, 1]} : vector<4x256xf32> to vector<1x256xf32>
    %97 = vector.broadcast %95 : vector<8x1xf32> to vector<8x256xf32>
    %98 = vector.broadcast %96 : vector<1x256xf32> to vector<8x256xf32>
    %99 = arith.subf %97, %98 : vector<8x256xf32>
    %100 = math.absf %99 : vector<8x256xf32>
    %101 = arith.addf %94, %100 : vector<8x256xf32>
    %102 = vector.extract_strided_slice %61 {offsets = [0, 2], sizes = [8, 1], strides = [1, 1]} : vector<8x4xf32> to vector<8x1xf32>
    %103 = vector.extract_strided_slice %59 {offsets = [2, 0], sizes = [1, 256], strides = [1, 1]} : vector<4x256xf32> to vector<1x256xf32>
    %104 = vector.broadcast %102 : vector<8x1xf32> to vector<8x256xf32>
    %105 = vector.broadcast %103 : vector<1x256xf32> to vector<8x256xf32>
    %106 = arith.subf %104, %105 : vector<8x256xf32>
    %107 = math.absf %106 : vector<8x256xf32>
    %108 = arith.addf %101, %107 : vector<8x256xf32>
    %109 = vector.extract_strided_slice %61 {offsets = [0, 3], sizes = [8, 1], strides = [1, 1]} : vector<8x4xf32> to vector<8x1xf32>
    %110 = vector.extract_strided_slice %59 {offsets = [3, 0], sizes = [1, 256], strides = [1, 1]} : vector<4x256xf32> to vector<1x256xf32>
    %111 = vector.broadcast %109 : vector<8x1xf32> to vector<8x256xf32>
    %112 = vector.broadcast %110 : vector<1x256xf32> to vector<8x256xf32>
    %113 = arith.subf %111, %112 : vector<8x256xf32>
    %114 = math.absf %113 : vector<8x256xf32>
    %115 = arith.addf %108, %114 : vector<8x256xf32>
    %116 = vector.broadcast %51 : vector<8x1xf32> to vector<8x256xf32>
    %117 = arith.mulf %115, %116 : vector<8x256xf32>
    %118 = arith.maximumf %88, %117 : vector<8x256xf32>
    %cst_30 = arith.constant 2.500000e+00 : f32
    %119 = vector.broadcast %cst_30 : f32 to vector<8x256xf32>
    %120 = arith.mulf %119, %118 : vector<8x256xf32>
    %121 = arith.addf %57, %120 : vector<8x256xf32>
    %122 = vector.extract_strided_slice %60 {offsets = [0, 0], sizes = [8, 1], strides = [1, 1]} : vector<8x4xf32> to vector<8x1xf32>
    %123 = vector.extract_strided_slice %60 {offsets = [0, 1], sizes = [8, 1], strides = [1, 1]} : vector<8x4xf32> to vector<8x1xf32>
    %124 = vector.extract_strided_slice %60 {offsets = [0, 2], sizes = [8, 1], strides = [1, 1]} : vector<8x4xf32> to vector<8x1xf32>
    %125 = vector.extract_strided_slice %60 {offsets = [0, 3], sizes = [8, 1], strides = [1, 1]} : vector<8x4xf32> to vector<8x1xf32>
    %126 = vector.extract_strided_slice %58 {offsets = [0, 0], sizes = [1, 256], strides = [1, 1]} : vector<4x256xf32> to vector<1x256xf32>
    %127 = vector.extract_strided_slice %58 {offsets = [1, 0], sizes = [1, 256], strides = [1, 1]} : vector<4x256xf32> to vector<1x256xf32>
    %128 = vector.extract_strided_slice %58 {offsets = [2, 0], sizes = [1, 256], strides = [1, 1]} : vector<4x256xf32> to vector<1x256xf32>
    %129 = vector.extract_strided_slice %58 {offsets = [3, 0], sizes = [1, 256], strides = [1, 1]} : vector<4x256xf32> to vector<1x256xf32>
    %cst_31 = arith.constant 5.000000e-01 : f32
    %130 = vector.broadcast %cst_31 : f32 to vector<8x1xf32>
    %131 = arith.mulf %130, %124 : vector<8x1xf32>
    %132 = arith.subf %122, %131 : vector<8x1xf32>
    %cst_32 = arith.constant 5.000000e-01 : f32
    %133 = vector.broadcast %cst_32 : f32 to vector<8x1xf32>
    %134 = arith.mulf %133, %124 : vector<8x1xf32>
    %135 = arith.addf %122, %134 : vector<8x1xf32>
    %cst_33 = arith.constant 5.000000e-01 : f32
    %136 = vector.broadcast %cst_33 : f32 to vector<8x1xf32>
    %137 = arith.mulf %136, %125 : vector<8x1xf32>
    %138 = arith.subf %123, %137 : vector<8x1xf32>
    %cst_34 = arith.constant 5.000000e-01 : f32
    %139 = vector.broadcast %cst_34 : f32 to vector<8x1xf32>
    %140 = arith.mulf %139, %125 : vector<8x1xf32>
    %141 = arith.addf %123, %140 : vector<8x1xf32>
    %cst_35 = arith.constant 5.000000e-01 : f32
    %142 = vector.broadcast %cst_35 : f32 to vector<1x256xf32>
    %143 = arith.mulf %142, %128 : vector<1x256xf32>
    %144 = arith.subf %126, %143 : vector<1x256xf32>
    %cst_36 = arith.constant 5.000000e-01 : f32
    %145 = vector.broadcast %cst_36 : f32 to vector<1x256xf32>
    %146 = arith.mulf %145, %128 : vector<1x256xf32>
    %147 = arith.addf %126, %146 : vector<1x256xf32>
    %cst_37 = arith.constant 5.000000e-01 : f32
    %148 = vector.broadcast %cst_37 : f32 to vector<1x256xf32>
    %149 = arith.mulf %148, %129 : vector<1x256xf32>
    %150 = arith.subf %127, %149 : vector<1x256xf32>
    %cst_38 = arith.constant 5.000000e-01 : f32
    %151 = vector.broadcast %cst_38 : f32 to vector<1x256xf32>
    %152 = arith.mulf %151, %129 : vector<1x256xf32>
    %153 = arith.addf %127, %152 : vector<1x256xf32>
    %154 = arith.mulf %124, %125 : vector<8x1xf32>
    %155 = arith.mulf %128, %129 : vector<1x256xf32>
    %156 = vector.broadcast %135 : vector<8x1xf32> to vector<8x256xf32>
    %157 = vector.broadcast %147 : vector<1x256xf32> to vector<8x256xf32>
    %158 = arith.minimumf %156, %157 : vector<8x256xf32>
    %159 = vector.broadcast %132 : vector<8x1xf32> to vector<8x256xf32>
    %160 = vector.broadcast %144 : vector<1x256xf32> to vector<8x256xf32>
    %161 = arith.maximumf %159, %160 : vector<8x256xf32>
    %162 = arith.subf %158, %161 : vector<8x256xf32>
    %cst_39 = arith.constant 0.000000e+00 : f32
    %163 = vector.broadcast %cst_39 : f32 to vector<8x256xf32>
    %164 = arith.maximumf %162, %163 : vector<8x256xf32>
    %165 = vector.broadcast %141 : vector<8x1xf32> to vector<8x256xf32>
    %166 = vector.broadcast %153 : vector<1x256xf32> to vector<8x256xf32>
    %167 = arith.minimumf %165, %166 : vector<8x256xf32>
    %168 = vector.broadcast %138 : vector<8x1xf32> to vector<8x256xf32>
    %169 = vector.broadcast %150 : vector<1x256xf32> to vector<8x256xf32>
    %170 = arith.maximumf %168, %169 : vector<8x256xf32>
    %171 = arith.subf %167, %170 : vector<8x256xf32>
    %cst_40 = arith.constant 0.000000e+00 : f32
    %172 = vector.broadcast %cst_40 : f32 to vector<8x256xf32>
    %173 = arith.maximumf %171, %172 : vector<8x256xf32>
    %174 = arith.mulf %164, %173 : vector<8x256xf32>
    %175 = vector.broadcast %154 : vector<8x1xf32> to vector<8x256xf32>
    %176 = vector.broadcast %155 : vector<1x256xf32> to vector<8x256xf32>
    %177 = arith.addf %175, %176 : vector<8x256xf32>
    %178 = arith.subf %177, %174 : vector<8x256xf32>
    %179 = vector.broadcast %135 : vector<8x1xf32> to vector<8x256xf32>
    %180 = vector.broadcast %147 : vector<1x256xf32> to vector<8x256xf32>
    %181 = arith.maximumf %179, %180 : vector<8x256xf32>
    %182 = vector.broadcast %132 : vector<8x1xf32> to vector<8x256xf32>
    %183 = vector.broadcast %144 : vector<1x256xf32> to vector<8x256xf32>
    %184 = arith.minimumf %182, %183 : vector<8x256xf32>
    %185 = arith.subf %181, %184 : vector<8x256xf32>
    %186 = vector.broadcast %141 : vector<8x1xf32> to vector<8x256xf32>
    %187 = vector.broadcast %153 : vector<1x256xf32> to vector<8x256xf32>
    %188 = arith.maximumf %186, %187 : vector<8x256xf32>
    %189 = vector.broadcast %138 : vector<8x1xf32> to vector<8x256xf32>
    %190 = vector.broadcast %150 : vector<1x256xf32> to vector<8x256xf32>
    %191 = arith.minimumf %189, %190 : vector<8x256xf32>
    %192 = arith.subf %188, %191 : vector<8x256xf32>
    %193 = arith.mulf %185, %192 : vector<8x256xf32>
    %cst_41 = arith.constant 9.99999971E-10 : f32
    %194 = vector.broadcast %cst_41 : f32 to vector<8x256xf32>
    %195 = arith.addf %178, %194 : vector<8x256xf32>
    %196 = tpu.reciprocal %195 {approx = true} : vector<8x256xf32> -> vector<8x256xf32>
    %cst_42 = arith.constant 9.99999971E-10 : f32
    %197 = vector.broadcast %cst_42 : f32 to vector<8x256xf32>
    %198 = arith.addf %193, %197 : vector<8x256xf32>
    %199 = tpu.reciprocal %198 {approx = true} : vector<8x256xf32> -> vector<8x256xf32>
    %200 = arith.subf %193, %178 : vector<8x256xf32>
    %201 = arith.mulf %200, %199 : vector<8x256xf32>
    %202 = arith.mulf %174, %196 : vector<8x256xf32>
    %203 = arith.subf %201, %202 : vector<8x256xf32>
    %204 = vector.extract_strided_slice %61 {offsets = [0, 0], sizes = [8, 1], strides = [1, 1]} : vector<8x4xf32> to vector<8x1xf32>
    %205 = vector.extract_strided_slice %61 {offsets = [0, 1], sizes = [8, 1], strides = [1, 1]} : vector<8x4xf32> to vector<8x1xf32>
    %206 = vector.extract_strided_slice %61 {offsets = [0, 2], sizes = [8, 1], strides = [1, 1]} : vector<8x4xf32> to vector<8x1xf32>
    %207 = vector.extract_strided_slice %61 {offsets = [0, 3], sizes = [8, 1], strides = [1, 1]} : vector<8x4xf32> to vector<8x1xf32>
    %208 = vector.extract_strided_slice %59 {offsets = [0, 0], sizes = [1, 256], strides = [1, 1]} : vector<4x256xf32> to vector<1x256xf32>
    %209 = vector.extract_strided_slice %59 {offsets = [1, 0], sizes = [1, 256], strides = [1, 1]} : vector<4x256xf32> to vector<1x256xf32>
    %210 = vector.extract_strided_slice %59 {offsets = [2, 0], sizes = [1, 256], strides = [1, 1]} : vector<4x256xf32> to vector<1x256xf32>
    %211 = vector.extract_strided_slice %59 {offsets = [3, 0], sizes = [1, 256], strides = [1, 1]} : vector<4x256xf32> to vector<1x256xf32>
    %cst_43 = arith.constant 5.000000e-01 : f32
    %212 = vector.broadcast %cst_43 : f32 to vector<8x1xf32>
    %213 = arith.mulf %212, %206 : vector<8x1xf32>
    %214 = arith.subf %204, %213 : vector<8x1xf32>
    %cst_44 = arith.constant 5.000000e-01 : f32
    %215 = vector.broadcast %cst_44 : f32 to vector<8x1xf32>
    %216 = arith.mulf %215, %206 : vector<8x1xf32>
    %217 = arith.addf %204, %216 : vector<8x1xf32>
    %cst_45 = arith.constant 5.000000e-01 : f32
    %218 = vector.broadcast %cst_45 : f32 to vector<8x1xf32>
    %219 = arith.mulf %218, %207 : vector<8x1xf32>
    %220 = arith.subf %205, %219 : vector<8x1xf32>
    %cst_46 = arith.constant 5.000000e-01 : f32
    %221 = vector.broadcast %cst_46 : f32 to vector<8x1xf32>
    %222 = arith.mulf %221, %207 : vector<8x1xf32>
    %223 = arith.addf %205, %222 : vector<8x1xf32>
    %cst_47 = arith.constant 5.000000e-01 : f32
    %224 = vector.broadcast %cst_47 : f32 to vector<1x256xf32>
    %225 = arith.mulf %224, %210 : vector<1x256xf32>
    %226 = arith.subf %208, %225 : vector<1x256xf32>
    %cst_48 = arith.constant 5.000000e-01 : f32
    %227 = vector.broadcast %cst_48 : f32 to vector<1x256xf32>
    %228 = arith.mulf %227, %210 : vector<1x256xf32>
    %229 = arith.addf %208, %228 : vector<1x256xf32>
    %cst_49 = arith.constant 5.000000e-01 : f32
    %230 = vector.broadcast %cst_49 : f32 to vector<1x256xf32>
    %231 = arith.mulf %230, %211 : vector<1x256xf32>
    %232 = arith.subf %209, %231 : vector<1x256xf32>
    %cst_50 = arith.constant 5.000000e-01 : f32
    %233 = vector.broadcast %cst_50 : f32 to vector<1x256xf32>
    %234 = arith.mulf %233, %211 : vector<1x256xf32>
    %235 = arith.addf %209, %234 : vector<1x256xf32>
    %236 = arith.mulf %206, %207 : vector<8x1xf32>
    %237 = arith.mulf %210, %211 : vector<1x256xf32>
    %238 = vector.broadcast %217 : vector<8x1xf32> to vector<8x256xf32>
    %239 = vector.broadcast %229 : vector<1x256xf32> to vector<8x256xf32>
    %240 = arith.minimumf %238, %239 : vector<8x256xf32>
    %241 = vector.broadcast %214 : vector<8x1xf32> to vector<8x256xf32>
    %242 = vector.broadcast %226 : vector<1x256xf32> to vector<8x256xf32>
    %243 = arith.maximumf %241, %242 : vector<8x256xf32>
    %244 = arith.subf %240, %243 : vector<8x256xf32>
    %cst_51 = arith.constant 0.000000e+00 : f32
    %245 = vector.broadcast %cst_51 : f32 to vector<8x256xf32>
    %246 = arith.maximumf %244, %245 : vector<8x256xf32>
    %247 = vector.broadcast %223 : vector<8x1xf32> to vector<8x256xf32>
    %248 = vector.broadcast %235 : vector<1x256xf32> to vector<8x256xf32>
    %249 = arith.minimumf %247, %248 : vector<8x256xf32>
    %250 = vector.broadcast %220 : vector<8x1xf32> to vector<8x256xf32>
    %251 = vector.broadcast %232 : vector<1x256xf32> to vector<8x256xf32>
    %252 = arith.maximumf %250, %251 : vector<8x256xf32>
    %253 = arith.subf %249, %252 : vector<8x256xf32>
    %cst_52 = arith.constant 0.000000e+00 : f32
    %254 = vector.broadcast %cst_52 : f32 to vector<8x256xf32>
    %255 = arith.maximumf %253, %254 : vector<8x256xf32>
    %256 = arith.mulf %246, %255 : vector<8x256xf32>
    %257 = vector.broadcast %236 : vector<8x1xf32> to vector<8x256xf32>
    %258 = vector.broadcast %237 : vector<1x256xf32> to vector<8x256xf32>
    %259 = arith.addf %257, %258 : vector<8x256xf32>
    %260 = arith.subf %259, %256 : vector<8x256xf32>
    %261 = vector.broadcast %217 : vector<8x1xf32> to vector<8x256xf32>
    %262 = vector.broadcast %229 : vector<1x256xf32> to vector<8x256xf32>
    %263 = arith.maximumf %261, %262 : vector<8x256xf32>
    %264 = vector.broadcast %214 : vector<8x1xf32> to vector<8x256xf32>
    %265 = vector.broadcast %226 : vector<1x256xf32> to vector<8x256xf32>
    %266 = arith.minimumf %264, %265 : vector<8x256xf32>
    %267 = arith.subf %263, %266 : vector<8x256xf32>
    %268 = vector.broadcast %223 : vector<8x1xf32> to vector<8x256xf32>
    %269 = vector.broadcast %235 : vector<1x256xf32> to vector<8x256xf32>
    %270 = arith.maximumf %268, %269 : vector<8x256xf32>
    %271 = vector.broadcast %220 : vector<8x1xf32> to vector<8x256xf32>
    %272 = vector.broadcast %232 : vector<1x256xf32> to vector<8x256xf32>
    %273 = arith.minimumf %271, %272 : vector<8x256xf32>
    %274 = arith.subf %270, %273 : vector<8x256xf32>
    %275 = arith.mulf %267, %274 : vector<8x256xf32>
    %cst_53 = arith.constant 9.99999971E-10 : f32
    %276 = vector.broadcast %cst_53 : f32 to vector<8x256xf32>
    %277 = arith.addf %260, %276 : vector<8x256xf32>
    %278 = tpu.reciprocal %277 {approx = true} : vector<8x256xf32> -> vector<8x256xf32>
    %cst_54 = arith.constant 9.99999971E-10 : f32
    %279 = vector.broadcast %cst_54 : f32 to vector<8x256xf32>
    %280 = arith.addf %275, %279 : vector<8x256xf32>
    %281 = tpu.reciprocal %280 {approx = true} : vector<8x256xf32> -> vector<8x256xf32>
    %282 = arith.subf %275, %260 : vector<8x256xf32>
    %283 = arith.mulf %282, %281 : vector<8x256xf32>
    %284 = arith.mulf %256, %278 : vector<8x256xf32>
    %285 = arith.subf %283, %284 : vector<8x256xf32>
    %cst_55 = arith.constant 1.000000e+00 : f32
    %286 = vector.broadcast %cst_55 : f32 to vector<8x1xf32>
    %287 = arith.subf %286, %51 : vector<8x1xf32>
    %288 = vector.broadcast %287 : vector<8x1xf32> to vector<8x256xf32>
    %289 = arith.mulf %203, %288 : vector<8x256xf32>
    %290 = arith.addf %285, %289 : vector<8x256xf32>
    %291 = arith.maximumf %203, %290 : vector<8x256xf32>
    %cst_56 = arith.constant 1.000000e+00 : f32
    %292 = vector.broadcast %cst_56 : f32 to vector<8x256xf32>
    %293 = arith.mulf %292, %291 : vector<8x256xf32>
    %294 = arith.addf %121, %293 : vector<8x256xf32>
    %c0_57 = arith.constant 0 : index
    %c0_58 = arith.constant 0 : index
    %295 = vector.load %arg9[%c0_57, %c0_58] : memref<8x256xf32, #tpu.memory_space<vmem>>, vector<8x256xf32>
    tpu.vector_store %arg9[%c0_57, %c0_58], %294 {strides = array<i32>} : memref<8x256xf32, #tpu.memory_space<vmem>>, vector<8x256xf32>,
    return
  }
  func.func @transform_0(%arg0: i32) -> (i32, i32) {
    %c0_i32 = arith.constant 0 : i32
    %c0_i32_0 = arith.constant 0 : i32
    return %c0_i32, %arg0 : i32, i32
  }
  func.func @transform_1(%arg0: i32) -> (i32, i32) {
    %c0_i32 = arith.constant 0 : i32
    %c0_i32_0 = arith.constant 0 : i32
    return %c0_i32, %arg0 : i32, i32
  }
  func.func @transform_2(%arg0: i32) -> (i32, i32) {
    %c0_i32 = arith.constant 0 : i32
    %c0_i32_0 = arith.constant 0 : i32
    return %c0_i32, %arg0 : i32, i32
  }
  func.func @transform_3(%arg0: i32) -> (i32, i32) {
    %c0_i32 = arith.constant 0 : i32
    %c0_i32_0 = arith.constant 0 : i32
    return %c0_i32, %arg0 : i32, i32
  }
  func.func @transform_4(%arg0: i32) -> (i32, i32) {
    %c0_i32 = arith.constant 0 : i32
    %c0_i32_0 = arith.constant 0 : i32
    %c0_i32_1 = arith.constant 0 : i32
    return %c0_i32, %c0_i32_0 : i32, i32
  }
  func.func @transform_5(%arg0: i32) -> (i32, i32) {
    %c0_i32 = arith.constant 0 : i32
    %c0_i32_0 = arith.constant 0 : i32
    %c0_i32_1 = arith.constant 0 : i32
    return %c0_i32, %c0_i32_0 : i32, i32
  }
  func.func @transform_6(%arg0: i32) -> (i32, i32) {
    %c0_i32 = arith.constant 0 : i32
    %c0_i32_0 = arith.constant 0 : i32
    %c0_i32_1 = arith.constant 0 : i32
    return %c0_i32, %c0_i32_0 : i32, i32
  }
  func.func @transform_7(%arg0: i32) -> (i32, i32) {
    %c0_i32 = arith.constant 0 : i32
    %c0_i32_0 = arith.constant 0 : i32
    %c0_i32_1 = arith.constant 0 : i32
    return %c0_i32, %c0_i32_0 : i32, i32
  }
  func.func @transform_8(%arg0: i32) -> (i32, i32) {
    %c0_i32 = arith.constant 0 : i32
    %c0_i32_0 = arith.constant 0 : i32
    return %c0_i32, %arg0 : i32, i32
  }
}

</mosaic_0001>

<llo_original>
// kernel: _hoi_cost_matrix_jit.1
$region0: #{_hoi_cost_matrix_jit.1}
  #allocation0 [shape = 'u32[]', space=smem, size = 0x4, offset = 0x4, fixed_abs, tag = 'smem constant byte address 0x4 - core index']
  #allocation1 [shape = 'u32[144,128]{1,0:T(1,128)}', space=vmem, size = 0x12000, scoped, tag = 'internal scratch']
  %s0 = inlined_call_operand.vmem [shape: f32[16,512], index: 0, kind: input, shape index: {}]
  %s1 = inlined_call_operand.vmem [shape: f32[10,512], index: 1, kind: input, shape index: {}]
  %s2 = inlined_call_operand.vmem [shape: f32[4,512], index: 2, kind: input, shape index: {}]
  %s3 = inlined_call_operand.vmem [shape: f32[4,512], index: 3, kind: input, shape index: {}]
  %s4 = inlined_call_operand.vmem [shape: f32[8,26], index: 4, kind: input, shape index: {}]
  %s5 = inlined_call_operand.vmem [shape: f32[8,4], index: 5, kind: input, shape index: {}]
  %s6 = inlined_call_operand.vmem [shape: f32[8,4], index: 6, kind: input, shape index: {}]
  %s7 = inlined_call_operand.vmem [shape: f32[8,3], index: 7, kind: input, shape index: {}]
  %s8 = inlined_call_operand.vmem [shape: f32[8,512], index: 8, kind: output, shape index: {}]
  %s9 = sld [smem:[#allocation0]]
  $region111: #{_hoi_cost_matrix_jit.1} parent=0
    _
  %s11 = ssub.s32 1, %s9
  %s12 = scalar_select 0, %s11, %s9
  $region1: #{_hoi_cost_matrix_jit.1} parent=0
    #allocation2 [shape = 'u8[32768]{0}', space=vmem, size = 0x8000, scoped, tag = 'input window, operand 0']
    #allocation3 [shape = 'u8[32768]{0}', space=vmem, size = 0x8000, scoped, tag = 'input window, operand 1']
    loop: start=0, step=1, limit=4
    $region2: #{_hoi_cost_matrix_jit.1} parent=1 // loop_pre_header
      _
    $region3: #{_hoi_cost_matrix_jit.1} parent=1 // loop_header
      %s14 = sphi 0, %s18
      %p15 = scmp.ge.s32.totalorder %s14, 4
      %s24 = sphi 0, %s26
      %s27 = sphi 0, %s24
      %s28 = sphi 0, %s27
      %s44 = sphi 0, %s28
      %s50 = sphi 0, %s52
      %s53 = sphi 0, %s50
      %s54 = sphi 0, %s53
      %s70 = sphi 0, %s54
      %s76 = sphi 0, %s78
      %s79 = sphi 0, %s76
      %s80 = sphi 0, %s79
      %s96 = sphi 0, %s80
      %s102 = sphi 0, %s104
      %s105 = sphi 0, %s102
      %s106 = sphi 0, %s105
      %s122 = sphi 0, %s106
      %s126 = sphi 0, %s126
      %s128 = sphi 0, %s126
      %s129 = sphi 0, %s128
      %s143 = sphi 0, %s129
      %s147 = sphi 0, %s147
      %s149 = sphi 0, %s147
      %s150 = sphi 0, %s149
      %s164 = sphi 0, %s150
      %s168 = sphi 0, %s168
      %s170 = sphi 0, %s168
      %s171 = sphi 0, %s170
      %s185 = sphi 0, %s171
      %s189 = sphi 0, %s189
      %s191 = sphi 0, %s189
      %s192 = sphi 0, %s191
      %s206 = sphi 0, %s192
      %s212 = sphi 0, %s214
      %s215 = sphi 0, %s212
      %s216 = sphi 0, %s215
      %s232 = sphi 0, %s216
    $region4: #{_hoi_cost_matrix_jit.1} parent=1 // loop_header_branch
      %17 = sbr.rel (%p15) target = $region8
    $region5: #{_hoi_cost_matrix_jit.1} parent=1 // loop_body
      %s19 = ssub.s32 %s14, 1
      %s20 = ssub.s32 %s14, 2
      %s21 = sadd.s32 %s14, 1
      %s22 = ssub.s32 %s14, %s21
      %p23 = scmp.eq.s32.totalorder %s22, 0
      %s25 = sadd.s32 %s24, 1
      %s26 = scalar_select %p23, %s24, %s25
      %p29 = pneg %p23
      %p30 = scmp.eq.s32.totalorder %s14, 1
      %p31 = por %p29, %p30
      %p32 = scmp.ne.s32.totalorder %s24, %s27
      %p33 = scmp.eq.s32.totalorder %s14, 0
      %p34 = por %p32, %p33
      %p35 = scmp.ne.s32.totalorder %s24, %s27
      %p36 = scmp.eq.s32.totalorder %s19, 1
      %p37 = por %p35, %p36
      %p38 = scmp.ne.s32.totalorder %s27, %s28
      %p39 = scmp.eq.s32.totalorder %s19, 0
      %p40 = por %p38, %p39
      %p41 = scmp.ne.s32.totalorder %s27, %s28
      %p42 = scmp.eq.s32.totalorder %s20, 1
      %p43 = por %p41, %p42
      %p45 = scmp.ne.s32.totalorder %s28, %s44
      %p46 = scmp.eq.s32.totalorder %s20, 0
      %p47 = por %p45, %p46
      %s48 = ssub.s32 %s14, %s21
      %p49 = scmp.eq.s32.totalorder %s48, 0
      %s51 = sadd.s32 %s50, 1
      %s52 = scalar_select %p49, %s50, %s51
      %p55 = pneg %p49
      %p56 = scmp.eq.s32.totalorder %s14, 1
      %p57 = por %p55, %p56
      %p58 = scmp.ne.s32.totalorder %s50, %s53
      %p59 = scmp.eq.s32.totalorder %s14, 0
      %p60 = por %p58, %p59
      %p61 = scmp.ne.s32.totalorder %s50, %s53
      %p62 = scmp.eq.s32.totalorder %s19, 1
      %p63 = por %p61, %p62
      %p64 = scmp.ne.s32.totalorder %s53, %s54
      %p65 = scmp.eq.s32.totalorder %s19, 0
      %p66 = por %p64, %p65
      %p67 = scmp.ne.s32.totalorder %s53, %s54
      %p68 = scmp.eq.s32.totalorder %s20, 1
      %p69 = por %p67, %p68
      %p71 = scmp.ne.s32.totalorder %s54, %s70
      %p72 = scmp.eq.s32.totalorder %s20, 0
      %p73 = por %p71, %p72
      %s74 = ssub.s32 %s14, %s21
      %p75 = scmp.eq.s32.totalorder %s74, 0
      %s77 = sadd.s32 %s76, 1
      %s78 = scalar_select %p75, %s76, %s77
      %p81 = pneg %p75
      %p82 = scmp.eq.s32.totalorder %s14, 1
      %p83 = por %p81, %p82
      %p84 = scmp.ne.s32.totalorder %s76, %s79
      %p85 = scmp.eq.s32.totalorder %s14, 0
      %p86 = por %p84, %p85
      %p87 = scmp.ne.s32.totalorder %s76, %s79
      %p88 = scmp.eq.s32.totalorder %s19, 1
      %p89 = por %p87, %p88
      %p90 = scmp.ne.s32.totalorder %s79, %s80
      %p91 = scmp.eq.s32.totalorder %s19, 0
      %p92 = por %p90, %p91
      %p93 = scmp.ne.s32.totalorder %s79, %s80
      %p94 = scmp.eq.s32.totalorder %s20, 1
      %p95 = por %p93, %p94
      %p97 = scmp.ne.s32.totalorder %s80, %s96
      %p98 = scmp.eq.s32.totalorder %s20, 0
      %p99 = por %p97, %p98
      %s100 = ssub.s32 %s14, %s21
      %p101 = scmp.eq.s32.totalorder %s100, 0
      %s103 = sadd.s32 %s102, 1
      %s104 = scalar_select %p101, %s102, %s103
      %p107 = pneg %p101
      %p108 = scmp.eq.s32.totalorder %s14, 1
      %p109 = por %p107, %p108
      %p110 = scmp.ne.s32.totalorder %s102, %s105
      %p111 = scmp.eq.s32.totalorder %s14, 0
      %p112 = por %p110, %p111
      %p113 = scmp.ne.s32.totalorder %s102, %s105
      %p114 = scmp.eq.s32.totalorder %s19, 1
      %p115 = por %p113, %p114
      %p116 = scmp.ne.s32.totalorder %s105, %s106
      %p117 = scmp.eq.s32.totalorder %s19, 0
      %p118 = por %p116, %p117
      %p119 = scmp.ne.s32.totalorder %s105, %s106
      %p120 = scmp.eq.s32.totalorder %s20, 1
      %p121 = por %p119, %p120
      %p123 = scmp.ne.s32.totalorder %s106, %s122
      %p124 = scmp.eq.s32.totalorder %s20, 0
      %p125 = por %p123, %p124
      %s127 = sadd.s32 %s126, 1
      %p130 = scmp.eq.s32.totalorder %s14, 1
      %p131 = scmp.ne.s32.totalorder %s126, %s128
      %p132 = scmp.eq.s32.totalorder %s14, 0
      %p133 = por %p131, %p132
      %p134 = scmp.ne.s32.totalorder %s126, %s128
      %p135 = scmp.eq.s32.totalorder %s19, 1
      %p136 = por %p134, %p135
      %p137 = scmp.ne.s32.totalorder %s128, %s129
      %p138 = scmp.eq.s32.totalorder %s19, 0
      %p139 = por %p137, %p138
      %p140 = scmp.ne.s32.totalorder %s128, %s129
      %p141 = scmp.eq.s32.totalorder %s20, 1
      %p142 = por %p140, %p141
      %p144 = scmp.ne.s32.totalorder %s129, %s143
      %p145 = scmp.eq.s32.totalorder %s20, 0
      %p146 = por %p144, %p145
      %s148 = sadd.s32 %s147, 1
      %p151 = scmp.eq.s32.totalorder %s14, 1
      %p152 = scmp.ne.s32.totalorder %s147, %s149
      %p153 = scmp.eq.s32.totalorder %s14, 0
      %p154 = por %p152, %p153
      %p155 = scmp.ne.s32.totalorder %s147, %s149
      %p156 = scmp.eq.s32.totalorder %s19, 1
      %p157 = por %p155, %p156
      %p158 = scmp.ne.s32.totalorder %s149, %s150
      %p159 = scmp.eq.s32.totalorder %s19, 0
      %p160 = por %p158, %p159
      %p161 = scmp.ne.s32.totalorder %s149, %s150
      %p162 = scmp.eq.s32.totalorder %s20, 1
      %p163 = por %p161, %p162
      %p165 = scmp.ne.s32.totalorder %s150, %s164
      %p166 = scmp.eq.s32.totalorder %s20, 0
      %p167 = por %p165, %p166
      %s169 = sadd.s32 %s168, 1
      %p172 = scmp.eq.s32.totalorder %s14, 1
      %p173 = scmp.ne.s32.totalorder %s168, %s170
      %p174 = scmp.eq.s32.totalorder %s14, 0
      %p175 = por %p173, %p174
      %p176 = scmp.ne.s32.totalorder %s168, %s170
      %p177 = scmp.eq.s32.totalorder %s19, 1
      %p178 = por %p176, %p177
      %p179 = scmp.ne.s32.totalorder %s170, %s171
      %p180 = scmp.eq.s32.totalorder %s19, 0
      %p181 = por %p179, %p180
      %p182 = scmp.ne.s32.totalorder %s170, %s171
      %p183 = scmp.eq.s32.totalorder %s20, 1
      %p184 = por %p182, %p183
      %p186 = scmp.ne.s32.totalorder %s171, %s185
      %p187 = scmp.eq.s32.totalorder %s20, 0
      %p188 = por %p186, %p187
      %s190 = sadd.s32 %s189, 1
      %p193 = scmp.eq.s32.totalorder %s14, 1
      %p194 = scmp.ne.s32.totalorder %s189, %s191
      %p195 = scmp.eq.s32.totalorder %s14, 0
      %p196 = por %p194, %p195
      %p197 = scmp.ne.s32.totalorder %s189, %s191
      %p198 = scmp.eq.s32.totalorder %s19, 1
      %p199 = por %p197, %p198
      %p200 = scmp.ne.s32.totalorder %s191, %s192
      %p201 = scmp.eq.s32.totalorder %s19, 0
      %p202 = por %p200, %p201
      %p203 = scmp.ne.s32.totalorder %s191, %s192
      %p204 = scmp.eq.s32.totalorder %s20, 1
      %p205 = por %p203, %p204
      %p207 = scmp.ne.s32.totalorder %s192, %s206
      %p208 = scmp.eq.s32.totalorder %s20, 0
      %p209 = por %p207, %p208
      %s210 = ssub.s32 %s14, %s21
      %p211 = scmp.eq.s32.totalorder %s210, 0
      %s213 = sadd.s32 %s212, 1
      %s214 = scalar_select %p211, %s212, %s213
      %p217 = pneg %p211
      %p218 = scmp.eq.s32.totalorder %s14, 1
      %p219 = por %p217, %p218
      %p220 = scmp.ne.s32.totalorder %s212, %s215
      %p221 = scmp.eq.s32.totalorder %s14, 0
      %p222 = por %p220, %p221
      %p223 = scmp.ne.s32.totalorder %s212, %s215
      %p224 = scmp.eq.s32.totalorder %s19, 1
      %p225 = por %p223, %p224
      %p226 = scmp.ne.s32.totalorder %s215, %s216
      %p227 = scmp.eq.s32.totalorder %s19, 0
      %p228 = por %p226, %p227
      %p229 = scmp.ne.s32.totalorder %s215, %s216
      %p230 = scmp.eq.s32.totalorder %s20, 1
      %p231 = por %p229, %p230
      %p233 = scmp.ne.s32.totalorder %s216, %s232
      %p234 = scmp.eq.s32.totalorder %s20, 0
      %p235 = por %p233, %p234
      %p236 = scmp.le.s32.totalorder 1, %s14
      %p237 = scmp.lt.s32.totalorder %s14, 3
      %p238 = pnand %p236, %p237
      %p239 = pneg %p238
      // Predicated region
      $region9: #{_hoi_cost_matrix_jit.1} parent=5 // pred_check
        _
      $region10: #{_hoi_cost_matrix_jit.1} parent=5 // pred_check_branch
        %241 = sbr.rel (%p238) target = $region12
      $region11: #{_hoi_cost_matrix_jit.1} parent=5 // pred_region
        %s242 = ssub.s32 %s14, 1
        // Predicated region
        $region13: #{_hoi_cost_matrix_jit.1} parent=11 // pred_check
          %p243 = pneg %p139
        $region14: #{_hoi_cost_matrix_jit.1} parent=11 // pred_check_branch
          %245 = sbr.rel (%p243) target = $region16
        $region15: #{_hoi_cost_matrix_jit.1} parent=11 // pred_region
          _
        $region16: #{_hoi_cost_matrix_jit.1} parent=11 // pred_fallthru
          _
        // Predicated region
        $region17: #{_hoi_cost_matrix_jit.1} parent=11 // pred_check
          %p246 = pneg %p160
        $region18: #{_hoi_cost_matrix_jit.1} parent=11 // pred_check_branch
          %248 = sbr.rel (%p246) target = $region20
        $region19: #{_hoi_cost_matrix_jit.1} parent=11 // pred_region
          _
        $region20: #{_hoi_cost_matrix_jit.1} parent=11 // pred_fallthru
          _
        // Predicated region
        $region21: #{_hoi_cost_matrix_jit.1} parent=11 // pred_check
          %p249 = pneg %p181
        $region22: #{_hoi_cost_matrix_jit.1} parent=11 // pred_check_branch
          %251 = sbr.rel (%p249) target = $region24
        $region23: #{_hoi_cost_matrix_jit.1} parent=11 // pred_region
          _
        $region24: #{_hoi_cost_matrix_jit.1} parent=11 // pred_fallthru
          _
        // Predicated region
        $region25: #{_hoi_cost_matrix_jit.1} parent=11 // pred_check
          %p252 = pneg %p202
        $region26: #{_hoi_cost_matrix_jit.1} parent=11 // pred_check_branch
          %254 = sbr.rel (%p252) target = $region28
        $region27: #{_hoi_cost_matrix_jit.1} parent=11 // pred_region
          _
        $region28: #{_hoi_cost_matrix_jit.1} parent=11 // pred_fallthru
          _
      $region12: #{_hoi_cost_matrix_jit.1} parent=5 // pred_fallthru
        _
      %p255 = scmp.lt.s32.totalorder %s14, 2
      // Predicated region
      $region29: #{_hoi_cost_matrix_jit.1} parent=5 // pred_check
        %p256 = pneg %p255
      $region30: #{_hoi_cost_matrix_jit.1} parent=5 // pred_check_branch
        %258 = sbr.rel (%p256) target = $region32
      $region31: #{_hoi_cost_matrix_jit.1} parent=5 // pred_region
        // Predicated region
        $region33: #{_hoi_cost_matrix_jit.1} parent=31 // pred_check
          %p259 = pneg %p34
        $region34: #{_hoi_cost_matrix_jit.1} parent=31 // pred_check_branch
          %261 = sbr.rel (%p259) target = $region36
        $region35: #{_hoi_cost_matrix_jit.1} parent=31 // pred_region
          %s262 = sand.u32 %s24, 1
          %s263 = sand.u32 %s24, 1
          %s264 = smul.addr %s263, 32
          %s265 = scalar_lea.vmem [#allocation2], %s264
          %s266 = smul.u32 2, %s14
          %s267 = smul.addr %s266, 8
          %s268 = scalar_lea.vmem %s0, %s267
          // Predicated region
          $region37: #{_hoi_cost_matrix_jit.1} parent=35 // pred_check
            _
          $region38: #{_hoi_cost_matrix_jit.1} parent=35 // pred_check_branch
            %270 = sbr.rel (0) target = $region40
          $region39: #{_hoi_cost_matrix_jit.1} parent=35 // pred_region
            // Predicated region
            $region41: #{_hoi_cost_matrix_jit.1} parent=39 // pred_check
              _
            $region42: #{_hoi_cost_matrix_jit.1} parent=39 // pred_check_branch
              %272 = sbr.rel (0) target = $region44
            $region43: #{_hoi_cost_matrix_jit.1} parent=39 // pred_region
              loop: start=0, step=1, limit=1
              $region45: #{_hoi_cost_matrix_jit.1} parent=43 // loop_pre_header
                _
              $region46: #{_hoi_cost_matrix_jit.1} parent=43 // loop_header
                %s274 = sphi 0, %s278
                %p275 = scmp.ge.s32.totalorder %s274, 1
                %s279 = sphi %s268, %s268
                %s280 = sphi %s265, %s265
              $region47: #{_hoi_cost_matrix_jit.1} parent=43 // loop_header_branch
                %277 = sbr.rel (%p275) target = $region51
              $region48: #{_hoi_cost_matrix_jit.1} parent=43 // loop_body
                %v281 = vld [vmem:[%s279] sm:$0xff]
                %282 = vst [vmem:[%s280] sm:$0xff] %v281
                %v283 = vld [vmem:[%s279 + $0x8] sm:$0xff]
                %284 = vst [vmem:[%s280 + $0x8] sm:$0xff] %v283
                %v285 = vld [vmem:[%s279 + $0x20] sm:$0xff]
                %286 = vst [vmem:[%s280 + $0x10] sm:$0xff] %v285
                %v287 = vld [vmem:[%s279 + $0x28] sm:$0xff]
                %288 = vst [vmem:[%s280 + $0x18] sm:$0xff] %v287
              $region49: #{_hoi_cost_matrix_jit.1} parent=43 // loop_footer
                %s278 = sadd.s32 1, %s274
              $region50: #{_hoi_cost_matrix_jit.1} parent=43 // loop_footer_branch
                %273 = sbr.rel target = $region46
              $region51: #{_hoi_cost_matrix_jit.1} parent=43 // loop_exit
                _
            $region44: #{_hoi_cost_matrix_jit.1} parent=39 // pred_fallthru
              _
            // Predicated region
            $region52: #{_hoi_cost_matrix_jit.1} parent=39 // pred_check
              _
            $region53: #{_hoi_cost_matrix_jit.1} parent=39 // pred_check_branch
              %290 = sbr.rel target = $region55
            $region54: #{_hoi_cost_matrix_jit.1} parent=39 // pred_region
              _
            $region55: #{_hoi_cost_matrix_jit.1} parent=39 // pred_fallthru
              _
          $region40: #{_hoi_cost_matrix_jit.1} parent=35 // pred_fallthru
            _
          %291 = vnop
        $region36: #{_hoi_cost_matrix_jit.1} parent=31 // pred_fallthru
          _
        // Predicated region
        $region56: #{_hoi_cost_matrix_jit.1} parent=31 // pred_check
          %p292 = pneg %p60
        $region57: #{_hoi_cost_matrix_jit.1} parent=31 // pred_check_branch
          %294 = sbr.rel (%p292) target = $region59
        $region58: #{_hoi_cost_matrix_jit.1} parent=31 // pred_region
          %s295 = sand.u32 %s50, 1
          %s296 = sand.u32 %s50, 1
          %s297 = smul.addr %s296, 32
          %s298 = scalar_lea.vmem [#allocation3], %s297
          %s299 = smul.u32 2, %s14
          %s300 = smul.addr %s299, 8
          %s301 = scalar_lea.vmem %s1, %s300
          // Predicated region
          $region60: #{_hoi_cost_matrix_jit.1} parent=58 // pred_check
            _
          $region61: #{_hoi_cost_matrix_jit.1} parent=58 // pred_check_branch
            %303 = sbr.rel (0) target = $region63
          $region62: #{_hoi_cost_matrix_jit.1} parent=58 // pred_region
            // Predicated region
            $region64: #{_hoi_cost_matrix_jit.1} parent=62 // pred_check
              _
            $region65: #{_hoi_cost_matrix_jit.1} parent=62 // pred_check_branch
              %305 = sbr.rel (0) target = $region67
            $region66: #{_hoi_cost_matrix_jit.1} parent=62 // pred_region
              loop: start=0, step=1, limit=1
              $region68: #{_hoi_cost_matrix_jit.1} parent=66 // loop_pre_header
                _
              $region69: #{_hoi_cost_matrix_jit.1} parent=66 // loop_header
                %s307 = sphi 0, %s311
                %p308 = scmp.ge.s32.totalorder %s307, 1
                %s312 = sphi %s301, %s301
                %s313 = sphi %s298, %s298
              $region70: #{_hoi_cost_matrix_jit.1} parent=66 // loop_header_branch
                %310 = sbr.rel (%p308) target = $region74
              $region71: #{_hoi_cost_matrix_jit.1} parent=66 // loop_body
                %v314 = vld [vmem:[%s312] sm:$0xff]
                %315 = vst [vmem:[%s313] sm:$0xff] %v314
                %v316 = vld [vmem:[%s312 + $0x8] sm:$0xff]
                %317 = vst [vmem:[%s313 + $0x8] sm:$0xff] %v316
                %v318 = vld [vmem:[%s312 + $0x20] sm:$0xff]
                %319 = vst [vmem:[%s313 + $0x10] sm:$0xff] %v318
                %v320 = vld [vmem:[%s312 + $0x28] sm:$0xff]
                %321 = vst [vmem:[%s313 + $0x18] sm:$0xff] %v320
              $region72: #{_hoi_cost_matrix_jit.1} parent=66 // loop_footer
                %s311 = sadd.s32 1, %s307
              $region73: #{_hoi_cost_matrix_jit.1} parent=66 // loop_footer_branch
                %306 = sbr.rel target = $region69
              $region74: #{_hoi_cost_matrix_jit.1} parent=66 // loop_exit
                _
            $region67: #{_hoi_cost_matrix_jit.1} parent=62 // pred_fallthru
              _
            // Predicated region
            $region75: #{_hoi_cost_matrix_jit.1} parent=62 // pred_check
              _
            $region76: #{_hoi_cost_matrix_jit.1} parent=62 // pred_check_branch
              %323 = sbr.rel target = $region78
            $region77: #{_hoi_cost_matrix_jit.1} parent=62 // pred_region
              _
            $region78: #{_hoi_cost_matrix_jit.1} parent=62 // pred_fallthru
              _
          $region63: #{_hoi_cost_matrix_jit.1} parent=58 // pred_fallthru
            _
          %324 = vnop
        $region59: #{_hoi_cost_matrix_jit.1} parent=31 // pred_fallthru
          _
        // Predicated region
        $region79: #{_hoi_cost_matrix_jit.1} parent=31 // pred_check
          %p325 = pneg %p86
        $region80: #{_hoi_cost_matrix_jit.1} parent=31 // pred_check_branch
          %327 = sbr.rel (%p325) target = $region82
        $region81: #{_hoi_cost_matrix_jit.1} parent=31 // pred_region
          %s328 = smul.u32 2, %s14
          %p329 = scmp.lt.s32.totalorder %s328, 3
          %s330 = scalar_select %p329, %s328, 3
          %s331 = smul.addr %s330, 4
          %s332 = scalar_lea.vmem %s2, %s331
          %s333 = smul.u32 2, %s14
        $region82: #{_hoi_cost_matrix_jit.1} parent=31 // pred_fallthru
          _
        // Predicated region
        $region83: #{_hoi_cost_matrix_jit.1} parent=31 // pred_check
          %p334 = pneg %p112
        $region84: #{_hoi_cost_matrix_jit.1} parent=31 // pred_check_branch
          %336 = sbr.rel (%p334) target = $region86
        $region85: #{_hoi_cost_matrix_jit.1} parent=31 // pred_region
          %s337 = smul.u32 2, %s14
          %p338 = scmp.lt.s32.totalorder %s337, 3
          %s339 = scalar_select %p338, %s337, 3
          %s340 = smul.addr %s339, 4
          %s341 = scalar_lea.vmem %s3, %s340
          %s342 = smul.u32 2, %s14
        $region86: #{_hoi_cost_matrix_jit.1} parent=31 // pred_fallthru
          _
      $region32: #{_hoi_cost_matrix_jit.1} parent=5 // pred_fallthru
        _
      %p343 = scmp.le.s32.totalorder 1, %s14
      %p344 = scmp.lt.s32.totalorder %s14, 3
      %p345 = pnand %p343, %p344
      %p346 = pneg %p345
      // Predicated region
      $region87: #{_hoi_cost_matrix_jit.1} parent=5 // pred_check
        _
      $region88: #{_hoi_cost_matrix_jit.1} parent=5 // pred_check_branch
        %348 = sbr.rel (%p345) target = $region90
      $region89: #{_hoi_cost_matrix_jit.1} parent=5 // pred_region
        %s349 = ssub.s32 %s14, 1
        %s350 = sand.u32 %s27, 1
        %s351 = sand.u32 %s27, 1
        %s352 = smul.addr %s351, 32
        %s353 = scalar_lea.vmem [#allocation2], %s352
        // Predicated region
        $region91: #{_hoi_cost_matrix_jit.1} parent=89 // pred_check
          %p354 = pneg %p40
        $region92: #{_hoi_cost_matrix_jit.1} parent=89 // pred_check_branch
          %356 = sbr.rel (%p354) target = $region94
        $region93: #{_hoi_cost_matrix_jit.1} parent=89 // pred_region
          _
        $region94: #{_hoi_cost_matrix_jit.1} parent=89 // pred_fallthru
          _
        %s357 = sand.u32 %s53, 1
        %s358 = sand.u32 %s53, 1
        %s359 = smul.addr %s358, 32
        %s360 = scalar_lea.vmem [#allocation3], %s359
        // Predicated region
        $region95: #{_hoi_cost_matrix_jit.1} parent=89 // pred_check
          %p361 = pneg %p66
        $region96: #{_hoi_cost_matrix_jit.1} parent=89 // pred_check_branch
          %363 = sbr.rel (%p361) target = $region98
        $region97: #{_hoi_cost_matrix_jit.1} parent=89 // pred_region
          _
        $region98: #{_hoi_cost_matrix_jit.1} parent=89 // pred_fallthru
          _
        %s364 = sand.u32 %s27, 1
        %s365 = sand.u32 %s27, 1
        %s366 = smul.addr %s365, 32
        %s367 = scalar_lea.vmem [#allocation2], %s366
        %p368 = pneg %p40
        %p369 = pneg %p37
        %s370 = sand.u32 %s53, 1
        %s371 = sand.u32 %s53, 1
        %s372 = smul.addr %s371, 32
        %s373 = scalar_lea.vmem [#allocation3], %s372
        %p374 = pneg %p66
        %p375 = pneg %p63
        %s376 = smul.u32 2, %s19
        %p377 = scmp.lt.s32.totalorder %s376, 3
        %s378 = scalar_select %p377, %s376, 3
        %s379 = smul.addr %s378, 4
        %s380 = scalar_lea.vmem %s2, %s379
        %p381 = pneg %p92
        %p382 = pneg %p89
        %s383 = smul.u32 2, %s19
        %p384 = scmp.lt.s32.totalorder %s383, 3
        %s385 = scalar_select %p384, %s383, 3
        %s386 = smul.addr %s385, 4
        %s387 = scalar_lea.vmem %s3, %s386
        %p388 = pneg %p118
        %p389 = pneg %p115
        %p390 = pneg %p139
        %p391 = pneg %p136
        %p392 = pneg %p160
        %p393 = pneg %p157
        %p394 = pneg %p181
        %p395 = pneg %p178
        %p396 = pneg %p202
        %p397 = pneg %p199
        %p398 = pneg %p228
        %p399 = pneg %p225
        %s400 = smul.u32 2, %s19
        %p401 = scmp.lt.s32.totalorder %s400, 3
        %s402 = scalar_select %p401, %s400, 3
        %s403 = smul.addr %s402, 8
        %s404 = scalar_lea.vmem %s8, %s403
        %s405 = smul.u32 2, %s19
        %s406 = smul.u32 2, %s19
        %s407 = smul.u32 2, %s19
        %p408 = scmp.lt.s32.totalorder %s407, 3
        %s409 = scalar_select %p408, %s407, 3
        %s410 = smul.addr %s409, 4
        %s411 = scalar_lea.vmem %s2, %s410
        %s412 = smul.u32 2, %s19
        %s413 = smul.u32 2, %s19
        %p414 = scmp.lt.s32.totalorder %s413, 3
        %s415 = scalar_select %p414, %s413, 3
        %s416 = smul.addr %s415, 4
        %s417 = scalar_lea.vmem %s3, %s416
        %s418 = smul.u32 2, %s19
        %s419 = smul.u32 2, %s19
        %p420 = scmp.lt.s32.totalorder %s419, 3
        %s421 = scalar_select %p420, %s419, 3
        %s422 = smul.addr %s421, 8
        %s423 = scalar_lea.vmem %s8, %s422
        %s424 = smul.u32 2, %s19
        %v425 = vld [vmem:[%s353] sm:$0xff]
        %v426 = vld [vmem:[%s353 + $0x8] sm:$0xff]
        %v427 = vld [vmem:[%s353 + $0x10] sm:$0xff]
        %v428 = vld [vmem:[%s353 + $0x18] sm:$0xff]
        %v429 = vmax.f32 %v425, %v427
        %v430 = vrot.slane %v429, 4
        %v431 = vmax.f32 %v429, %v430
        %v432 = vrot.slane %v431, 2
        %v433 = vmax.f32 %v431, %v432
        %v434 = vrot.slane %v433, 1
        %v435 = vmax.f32 %v433, %v434
        %v436 = vmax.f32 %v426, %v428
        %v437 = vrot.slane %v436, 4
        %v438 = vmax.f32 %v436, %v437
        %v439 = vrot.slane %v438, 2
        %v440 = vmax.f32 %v438, %v439
        %v441 = vrot.slane %v440, 1
        %v442 = vmax.f32 %v440, %v441
        %v443 = vsub.f32 %v425, %v435
        %v444 = vsub.f32 %v426, %v442
        %v445 = vsub.f32 %v427, %v435
        %v446 = vsub.f32 %v428, %v442
        %v447 = vmul.f32 %v443, 1.442695
        %v448 = vpow.pop %v447
        %v449 = vmul.f32 %v444, 1.442695
        %v450 = vpow.pop %v449
        %v451 = vmul.f32 %v445, 1.442695
        %v452 = vpow.pop %v451
        %v453 = vmul.f32 %v446, 1.442695
        %v454 = vpow.pop %v453
        %v455 = vadd.f32 %v448, %v452
        %v456 = vrot.slane %v455, 4
        %v457 = vadd.f32 %v455, %v456
        %v458 = vrot.slane %v457, 2
        %v459 = vadd.f32 %v457, %v458
        %v460 = vrot.slane %v459, 1
        %v461 = vadd.f32 %v459, %v460
        %v462 = vadd.f32 %v450, %v454
        %v463 = vrot.slane %v462, 4
        %v464 = vadd.f32 %v462, %v463
        %v465 = vrot.slane %v464, 2
        %v466 = vadd.f32 %v464, %v465
        %v467 = vrot.slane %v466, 1
        %v468 = vadd.f32 %v466, %v467
        %v469 = vrcp.pop %v461
        %v470 = vmul.f32 1.0, %v469
        %v471 = vrcp.pop %v468
        %v472 = vmul.f32 1.0, %v471
        %v473 = vmul.f32 %v448, %v470
        %v474 = vmul.f32 %v450, %v472
        %v475 = vmul.f32 %v452, %v470
        %v476 = vmul.f32 %v454, %v472
        %v477 = vsub.f32 1.0, %v473
        %v478 = vsub.f32 1.0, %v474
        %v479 = vsub.f32 1.0, %v475
        %v480 = vsub.f32 1.0, %v476
        %v481 = vmul.f32 %v477, %v477
        %v482 = vmul.f32 %v478, %v478
        %v483 = vmul.f32 %v479, %v479
        %v484 = vmul.f32 %v480, %v480
        %v485 = vmul.f32 %v481, 0.25
        %v486 = vmul.f32 %v482, 0.25
        %v487 = vmul.f32 %v483, 0.25
        %v488 = vmul.f32 %v484, 0.25
        %v489 = vadd.f32 %v473, 1e-08
        %v490 = vadd.f32 %v474, 1e-08
        %v491 = vadd.f32 %v475, 1e-08
        %v492 = vadd.f32 %v476, 1e-08
        %v493 = vlog2.pop %v489
        %v494 = vmul.f32 %v493, 0.6931472
        %v495 = vlog2.pop %v490
        %v496 = vmul.f32 %v495, 0.6931472
        %v497 = vlog2.pop %v491
        %v498 = vmul.f32 %v497, 0.6931472
        %v499 = vlog2.pop %v492
        %v500 = vmul.f32 %v499, 0.6931472
        %v501 = vsub.f32 0.0, %v494
        %v502 = vsub.f32 0.0, %v496
        %v503 = vsub.f32 0.0, %v498
        %v504 = vsub.f32 0.0, %v500
        %v505 = vmul.f32 %v485, %v501
        %v506 = vmul.f32 %v486, %v502
        %v507 = vmul.f32 %v487, %v503
        %v508 = vmul.f32 %v488, %v504
        %v509 = vmul.f32 %v473, %v473
        %v510 = vmul.f32 %v474, %v474
        %v511 = vmul.f32 %v475, %v475
        %v512 = vmul.f32 %v476, %v476
        %v513 = vmul.f32 %v509, 0.75
        %v514 = vmul.f32 %v510, 0.75
        %v515 = vmul.f32 %v511, 0.75
        %v516 = vmul.f32 %v512, 0.75
        %v517 = vadd.f32 %v477, 1e-08
        %v518 = vadd.f32 %v478, 1e-08
        %v519 = vadd.f32 %v479, 1e-08
        %v520 = vadd.f32 %v480, 1e-08
        %v521 = vlog2.pop %v517
        %v522 = vmul.f32 %v521, 0.6931472
        %v523 = vlog2.pop %v518
        %v524 = vmul.f32 %v523, 0.6931472
        %v525 = vlog2.pop %v519
        %v526 = vmul.f32 %v525, 0.6931472
        %v527 = vlog2.pop %v520
        %v528 = vmul.f32 %v527, 0.6931472
        %v529 = vsub.f32 0.0, %v522
        %v530 = vsub.f32 0.0, %v524
        %v531 = vsub.f32 0.0, %v526
        %v532 = vsub.f32 0.0, %v528
        %v533 = vmul.f32 %v513, %v529
        %v534 = vmul.f32 %v514, %v530
        %v535 = vmul.f32 %v515, %v531
        %v536 = vmul.f32 %v516, %v532
        %v537 = vsub.f32 %v505, %v533
        %v538 = vsub.f32 %v506, %v534
        %v539 = vsub.f32 %v507, %v535
        %v540 = vsub.f32 %v508, %v536
        %v541 = vld [vmem:[%s360] sm:$0xff]
        %v542 = vld [vmem:[%s360 + $0x8] sm:$0xff]
        %v543 = vld [vmem:[%s360 + $0x10] sm:$0x3]
        %v544 = vld [vmem:[%s360 + $0x18] sm:$0x3]
        %v545 = vmul.f32 %v541, 0.5
        %v546 = vmul.f32 %v542, 0.5
        %v547 = vmul.f32 %v543, 0.5
        %v548 = vmul.f32 %v544, 0.5
        %v549 = vtanh.pop %v545
        %v550 = vtanh.pop %v546
        %v551 = vtanh.pop %v547
        %v552 = vtanh.pop %v548
        %v553 = vadd.f32 %v549, 1.0
        %v554 = vadd.f32 %v550, 1.0
        %v555 = vadd.f32 %v551, 1.0
        %v556 = vadd.f32 %v552, 1.0
        %v557 = vmul.f32 %v553, 0.5
        %v558 = vmul.f32 %v554, 0.5
        %v559 = vmul.f32 %v555, 0.5
        %v560 = vmul.f32 %v556, 0.5
        %vm561 = vcmask 1041408
        %v562 = vsel %vm561, %v559, 0.0
        %v563 = vadd.f32 %v557, %v562
        %v564 = vrot.slane %v563, 4
        %v565 = vadd.f32 %v563, %v564
        %v566 = vrot.slane %v565, 2
        %v567 = vadd.f32 %v565, %v566
        %v568 = vrot.slane %v567, 1
        %v569 = vadd.f32 %v567, %v568
        %v570 = vsel %vm561, %v560, 0.0
        %v571 = vadd.f32 %v558, %v570
        %v572 = vrot.slane %v571, 4
        %v573 = vadd.f32 %v571, %v572
        %v574 = vrot.slane %v573, 2
        %v575 = vadd.f32 %v573, %v574
        %v576 = vrot.slane %v575, 1
        %v577 = vadd.f32 %v575, %v576
        %v578 = vld [vmem:[%s4] sm:$0xff]
        %v579 = vld [vmem:[%s7] sm:$0xff]
        %581 = vset.pattern.permute.xlu0 0
        %582 = vperm.xlu0 %581, %v579
        %v583 = vpop.permute.xlu0 %582
        %vm585 = vcmask 211968
        %v587 = vsel %vm585, %v578, 0
        %v590 = vsel %vm561, %v559, 0
        %v593 = vsel %vm561, %v560, 0
        %595 = vmatprep.subr.mxu0 %v538
        %596 = vmatpush1.msra.mxu0 %v537
        %597 = vmatprep.subr.mxu0 %v540
        %598 = vmatpush1.msra.mxu0 %v539
        %599 = vmatprep.subr.mxu0 %v558
        %600 = vmatpush1.msra.mxu0 %v557
        %601 = vmatprep.subr.mxu0 %v593
        %602 = vmatpush1.msra.mxu0 %v590
        %603 = vmatprep.subr.mxu0 0.0
        %604 = vmatpush1.msra.mxu0 0.0
        %605 = vmatprep.subr.mxu0 0.0
        %606 = vmatpush1.msra.mxu0 0.0
        %607 = vmatprep.subr.mxu0 0.0
        %608 = vmatpush1.msra.mxu0 0.0
        %609 = vmatprep.subr.mxu0 0.0
        %610 = vmatpush1.msra.mxu0 0.0
        %611 = vmatprep.subr.mxu0 0.0
        %612 = vmatpush1.msra.mxu0 0.0
        %613 = vmatprep.subr.mxu0 0.0
        %614 = vmatpush1.msra.mxu0 0.0
        %615 = vmatprep.subr.mxu0 0.0
        %616 = vmatpush1.msra.mxu0 0.0
        %617 = vmatprep.subr.mxu0 0.0
        %618 = vmatpush1.msra.mxu0 0.0
        %619 = vmatprep.subr.mxu0 0.0
        %620 = vmatpush1.msra.mxu0 0.0
        %621 = vmatprep.subr.mxu0 0.0
        %622 = vmatpush1.msra.mxu0 0.0
        %623 = vmatprep.subr.mxu0 0.0
        %624 = vmatpush1.msra.mxu0 0.0
        %625 = vmatprep.subr.mxu0 0.0
        %626 = vmatpush1.msra.mxu0 0.0
        %627 = vmatprep.subr.mxu0 0.0
        %628 = vmatpush1.msra.mxu0 0.0
        %629 = vmatprep.subr.mxu0 0.0
        %630 = vmatpush1.msra.mxu0 0.0
        %631 = vmatprep.subr.mxu0 0.0
        %632 = vmatpush1.msra.mxu0 0.0
        %633 = vmatprep.subr.mxu0 0.0
        %634 = vmatpush1.msra.mxu0 0.0
        %635 = vmatprep.subr.mxu0 0.0
        %636 = vmatpush1.msra.mxu0 0.0
        %637 = vmatprep.subr.mxu0 0.0
        %638 = vmatpush1.msra.mxu0 0.0
        %639 = vmatprep.subr.mxu0 0.0
        %640 = vmatpush1.msra.mxu0 0.0
        %641 = vmatprep.subr.mxu0 0.0
        %642 = vmatpush1.msra.mxu0 0.0
        %643 = vmatprep.subr.mxu0 0.0
        %644 = vmatpush1.msra.mxu0 0.0
        %645 = vmatprep.subr.mxu0 0.0
        %646 = vmatpush1.msra.mxu0 0.0
        %647 = vmatprep.subr.mxu0 0.0
        %648 = vmatpush1.msra.mxu0 0.0
        %649 = vmatprep.subr.mxu0 0.0
        %650 = vmatpush1.msra.mxu0 0.0
        %651 = vmatprep.subr.mxu0 0.0
        %652 = vmatpush1.msra.mxu0 0.0
        %653 = vmatprep.subr.mxu0 0.0
        %654 = vmatpush1.msra.mxu0 0.0
        %655 = vmatprep.subr.mxu0 0.0
        %656 = vmatpush1.msra.mxu0 0.0
        %657 = vmatprep.subr.mxu0 0.0
        %658 = vmatpush1.msra.mxu0 0.0
        %659 = vmatprep.mubr.f32.mxu0 0.0
        %660 = vmatmul.mubr.f32.gmra.mrb[0].mxu0 %v587
        %v661 = vpop.f32.mrb[0].mxu0
        %v662 = vadd.f32 %v583, %v661
        %v663 = vpop.f32.mrb[0].mxu0
        %v664 = vadd.f32 %v583, %v663
        %665 = vdwg.mxu0
        %666 = vset.pattern.permute.xlu0 1
        %667 = vperm.xlu0 %666, %v579
        %v668 = vpop.permute.xlu0 %667
        %v670 = vmul.f32 %v668, %v569
        %v671 = vmul.f32 %v668, %v577
        %v672 = vadd.f32 %v662, %v670
        %v673 = vadd.f32 %v664, %v671
        %v674 = vld [vmem:[%s411] sm:$0xff]
        %v675 = vld [vmem:[%s417] sm:$0xff]
        %v676 = vld [vmem:[%s5] sm:$0xff]
        %v677 = vld [vmem:[%s6] sm:$0xff]
        %679 = vset.pattern.permute.xlu0 0
        %680 = vperm.xlu0 %679, %v676
        %v681 = vpop.permute.xlu0 %680
        %v684 = vlaneseq
        %v685 = vshrl.u32 %v684, 7
        %v686 = vsub.s32 0, %v685
        %v687 = vrot.slane %v674, %v686
        %v688 = vlaneseq
        %v689 = vshrl.u32 %v688, 7
        %v690 = vsub.s32 4, %v689
        %v691 = vrot.slane %v674, %v690
        %v694 = vlaneseq
        %v695 = vshrl.u32 %v694, 7
        %v696 = vsub.s32 0, %v695
        %v697 = vrot.slane %v687, %v696
        %v698 = vlaneseq
        %v699 = vshrl.u32 %v698, 7
        %v700 = vsub.s32 0, %v699
        %v701 = vrot.slane %v691, %v700
        %v702 = vsub.f32 %v681, %v697
        %v703 = vsub.f32 %v681, %v701
        %v704 = vand.u32 2147483647, %v702
        %v705 = vand.u32 2147483647, %v703
        %706 = vset.pattern.permute.xlu0 1
        %707 = vperm.xlu0 %706, %v676
        %v708 = vpop.permute.xlu0 %707
        %v710 = vlaneseq
        %v711 = vshrl.u32 %v710, 7
        %v712 = vsub.s32 1, %v711
        %v713 = vrot.slane %v674, %v712
        %v714 = vlaneseq
        %v715 = vshrl.u32 %v714, 7
        %v716 = vsub.s32 5, %v715
        %v717 = vrot.slane %v674, %v716
        %v720 = vlaneseq
        %v721 = vshrl.u32 %v720, 7
        %v722 = vsub.s32 1, %v721
        %v723 = vrot.slane %v713, %v722
        %v724 = vlaneseq
        %v725 = vshrl.u32 %v724, 7
        %v726 = vsub.s32 1, %v725
        %v727 = vrot.slane %v717, %v726
        %v728 = vsub.f32 %v708, %v723
        %v729 = vsub.f32 %v708, %v727
        %v730 = vand.u32 2147483647, %v728
        %v731 = vand.u32 2147483647, %v729
        %v732 = vadd.f32 %v704, %v730
        %v733 = vadd.f32 %v705, %v731
        %734 = vset.pattern.permute.xlu0 2
        %735 = vperm.xlu0 %734, %v676
        %v736 = vpop.permute.xlu0 %735
        %v738 = vlaneseq
        %v739 = vshrl.u32 %v738, 7
        %v740 = vsub.s32 2, %v739
        %v741 = vrot.slane %v674, %v740
        %v742 = vlaneseq
        %v743 = vshrl.u32 %v742, 7
        %v744 = vsub.s32 6, %v743
        %v745 = vrot.slane %v674, %v744
        %v748 = vlaneseq
        %v749 = vshrl.u32 %v748, 7
        %v750 = vsub.s32 2, %v749
        %v751 = vrot.slane %v741, %v750
        %v752 = vlaneseq
        %v753 = vshrl.u32 %v752, 7
        %v754 = vsub.s32 2, %v753
        %v755 = vrot.slane %v745, %v754
        %v756 = vsub.f32 %v736, %v751
        %v757 = vsub.f32 %v736, %v755
        %v758 = vand.u32 2147483647, %v756
        %v759 = vand.u32 2147483647, %v757
        %v760 = vadd.f32 %v732, %v758
        %v761 = vadd.f32 %v733, %v759
        %762 = vset.pattern.permute.xlu0 3
        %763 = vperm.xlu0 %762, %v676
        %v764 = vpop.permute.xlu0 %763
        %v766 = vlaneseq
        %v767 = vshrl.u32 %v766, 7
        %v768 = vsub.s32 3, %v767
        %v769 = vrot.slane %v674, %v768
        %v770 = vlaneseq
        %v771 = vshrl.u32 %v770, 7
        %v772 = vsub.s32 7, %v771
        %v773 = vrot.slane %v674, %v772
        %v776 = vlaneseq
        %v777 = vshrl.u32 %v776, 7
        %v778 = vsub.s32 3, %v777
        %v779 = vrot.slane %v769, %v778
        %v780 = vlaneseq
        %v781 = vshrl.u32 %v780, 7
        %v782 = vsub.s32 3, %v781
        %v783 = vrot.slane %v773, %v782
        %v784 = vsub.f32 %v764, %v779
        %v785 = vsub.f32 %v764, %v783
        %v786 = vand.u32 2147483647, %v784
        %v787 = vand.u32 2147483647, %v785
        %v788 = vadd.f32 %v760, %v786
        %v789 = vadd.f32 %v761, %v787
        %791 = vset.pattern.permute.xlu0 0
        %792 = vperm.xlu0 %791, %v677
        %v793 = vpop.permute.xlu0 %792
        %v796 = vlaneseq
        %v797 = vshrl.u32 %v796, 7
        %v798 = vsub.s32 0, %v797
        %v799 = vrot.slane %v675, %v798
        %v800 = vlaneseq
        %v801 = vshrl.u32 %v800, 7
        %v802 = vsub.s32 4, %v801
        %v803 = vrot.slane %v675, %v802
        %v806 = vlaneseq
        %v807 = vshrl.u32 %v806, 7
        %v808 = vsub.s32 0, %v807
        %v809 = vrot.slane %v799, %v808
        %v810 = vlaneseq
        %v811 = vshrl.u32 %v810, 7
        %v812 = vsub.s32 0, %v811
        %v813 = vrot.slane %v803, %v812
        %v814 = vsub.f32 %v793, %v809
        %v815 = vsub.f32 %v793, %v813
        %v816 = vand.u32 2147483647, %v814
        %v817 = vand.u32 2147483647, %v815
        %818 = vset.pattern.permute.xlu0 1
        %819 = vperm.xlu0 %818, %v677
        %v820 = vpop.permute.xlu0 %819
        %v822 = vlaneseq
        %v823 = vshrl.u32 %v822, 7
        %v824 = vsub.s32 1, %v823
        %v825 = vrot.slane %v675, %v824
        %v826 = vlaneseq
        %v827 = vshrl.u32 %v826, 7
        %v828 = vsub.s32 5, %v827
        %v829 = vrot.slane %v675, %v828
        %v832 = vlaneseq
        %v833 = vshrl.u32 %v832, 7
        %v834 = vsub.s32 1, %v833
        %v835 = vrot.slane %v825, %v834
        %v836 = vlaneseq
        %v837 = vshrl.u32 %v836, 7
        %v838 = vsub.s32 1, %v837
        %v839 = vrot.slane %v829, %v838
        %v840 = vsub.f32 %v820, %v835
        %v841 = vsub.f32 %v820, %v839
        %v842 = vand.u32 2147483647, %v840
        %v843 = vand.u32 2147483647, %v841
        %v844 = vadd.f32 %v816, %v842
        %v845 = vadd.f32 %v817, %v843
        %846 = vset.pattern.permute.xlu0 2
        %847 = vperm.xlu0 %846, %v677
        %v848 = vpop.permute.xlu0 %847
        %v850 = vlaneseq
        %v851 = vshrl.u32 %v850, 7
        %v852 = vsub.s32 2, %v851
        %v853 = vrot.slane %v675, %v852
        %v854 = vlaneseq
        %v855 = vshrl.u32 %v854, 7
        %v856 = vsub.s32 6, %v855
        %v857 = vrot.slane %v675, %v856
        %v860 = vlaneseq
        %v861 = vshrl.u32 %v860, 7
        %v862 = vsub.s32 2, %v861
        %v863 = vrot.slane %v853, %v862
        %v864 = vlaneseq
        %v865 = vshrl.u32 %v864, 7
        %v866 = vsub.s32 2, %v865
        %v867 = vrot.slane %v857, %v866
        %v868 = vsub.f32 %v848, %v863
        %v869 = vsub.f32 %v848, %v867
        %v870 = vand.u32 2147483647, %v868
        %v871 = vand.u32 2147483647, %v869
        %v872 = vadd.f32 %v844, %v870
        %v873 = vadd.f32 %v845, %v871
        %874 = vset.pattern.permute.xlu0 3
        %875 = vperm.xlu0 %874, %v677
        %v876 = vpop.permute.xlu0 %875
        %v878 = vlaneseq
        %v879 = vshrl.u32 %v878, 7
        %v880 = vsub.s32 3, %v879
        %v881 = vrot.slane %v675, %v880
        %v882 = vlaneseq
        %v883 = vshrl.u32 %v882, 7
        %v884 = vsub.s32 7, %v883
        %v885 = vrot.slane %v675, %v884
        %v888 = vlaneseq
        %v889 = vshrl.u32 %v888, 7
        %v890 = vsub.s32 3, %v889
        %v891 = vrot.slane %v881, %v890
        %v892 = vlaneseq
        %v893 = vshrl.u32 %v892, 7
        %v894 = vsub.s32 3, %v893
        %v895 = vrot.slane %v885, %v894
        %v896 = vsub.f32 %v876, %v891
        %v897 = vsub.f32 %v876, %v895
        %v898 = vand.u32 2147483647, %v896
        %v899 = vand.u32 2147483647, %v897
        %v900 = vadd.f32 %v872, %v898
        %v901 = vadd.f32 %v873, %v899
        %902 = vset.pattern.permute.xlu0 2
        %903 = vperm.xlu0 %902, %v579
        %v904 = vpop.permute.xlu0 %903
        %v906 = vmul.f32 %v900, %v904
        %v907 = vmul.f32 %v901, %v904
        %v908 = vmax.f32 %v788, %v906
        %v909 = vmax.f32 %v789, %v907
        %v910 = vmul.f32 %v908, 2.5
        %v911 = vmul.f32 %v909, 2.5
        %v912 = vadd.f32 %v672, %v910
        %v913 = vadd.f32 %v673, %v911
        %v914 = vmul.f32 %v676, 0.5
        %916 = vrot.lane.b32.xlu0 %v914, 126
        %v917 = vpop.permute.xlu0 %916
        %v919 = vsub.f32 %v676, %v917
        %v920 = vadd.f32 %v676, %v917
        %v921 = vmul.f32 %v674, 0.5
        %v923 = vrot.slane %v921, 6
        %v924 = vrot.slane %v923, 4
        %v926 = vsub.f32 %v674, %v924
        %v927 = vadd.f32 %v674, %v924
        %928 = vrot.lane.b32.xlu0 %v676, 127
        %v929 = vpop.permute.xlu0 %928
        %v931 = vmul.f32 %v676, %v929
        %v932 = vrot.slane %v674, 5
        %v933 = vrot.slane %v932, 4
        %v935 = vmul.f32 %v674, %v933
        %937 = vset.pattern.permute.xlu0 0
        %938 = vperm.xlu0 %937, %v920
        %v939 = vpop.permute.xlu0 %938
        %v942 = vlaneseq
        %v943 = vshrl.u32 %v942, 7
        %v944 = vsub.s32 0, %v943
        %v945 = vrot.slane %v927, %v944
        %v946 = vlaneseq
        %v947 = vshrl.u32 %v946, 7
        %v948 = vsub.s32 4, %v947
        %v949 = vrot.slane %v927, %v948
        %v952 = vlaneseq
        %v953 = vshrl.u32 %v952, 7
        %v954 = vsub.s32 0, %v953
        %v955 = vrot.slane %v945, %v954
        %v956 = vlaneseq
        %v957 = vshrl.u32 %v956, 7
        %v958 = vsub.s32 0, %v957
        %v959 = vrot.slane %v949, %v958
        %v960 = vmin.f32 %v939, %v955
        %v961 = vmin.f32 %v939, %v959
        %963 = vset.pattern.permute.xlu0 0
        %964 = vperm.xlu0 %963, %v919
        %v965 = vpop.permute.xlu0 %964
        %v968 = vlaneseq
        %v969 = vshrl.u32 %v968, 7
        %v970 = vsub.s32 0, %v969
        %v971 = vrot.slane %v926, %v970
        %v972 = vlaneseq
        %v973 = vshrl.u32 %v972, 7
        %v974 = vsub.s32 4, %v973
        %v975 = vrot.slane %v926, %v974
        %v978 = vlaneseq
        %v979 = vshrl.u32 %v978, 7
        %v980 = vsub.s32 0, %v979
        %v981 = vrot.slane %v971, %v980
        %v982 = vlaneseq
        %v983 = vshrl.u32 %v982, 7
        %v984 = vsub.s32 0, %v983
        %v985 = vrot.slane %v975, %v984
        %v986 = vmax.f32 %v965, %v981
        %v987 = vmax.f32 %v965, %v985
        %v988 = vsub.f32 %v960, %v986
        %v989 = vsub.f32 %v961, %v987
        %v990 = vmax.f32 %v988, 0.0
        %v991 = vmax.f32 %v989, 0.0
        %992 = vset.pattern.permute.xlu0 1
        %993 = vperm.xlu0 %992, %v920
        %v994 = vpop.permute.xlu0 %993
        %v996 = vlaneseq
        %v997 = vshrl.u32 %v996, 7
        %v998 = vsub.s32 1, %v997
        %v999 = vrot.slane %v927, %v998
        %v1000 = vlaneseq
        %v1001 = vshrl.u32 %v1000, 7
        %v1002 = vsub.s32 5, %v1001
        %v1003 = vrot.slane %v927, %v1002
        %v1006 = vlaneseq
        %v1007 = vshrl.u32 %v1006, 7
        %v1008 = vsub.s32 1, %v1007
        %v1009 = vrot.slane %v999, %v1008
        %v1010 = vlaneseq
        %v1011 = vshrl.u32 %v1010, 7
        %v1012 = vsub.s32 1, %v1011
        %v1013 = vrot.slane %v1003, %v1012
        %v1014 = vmin.f32 %v994, %v1009
        %v1015 = vmin.f32 %v994, %v1013
        %1016 = vset.pattern.permute.xlu0 1
        %1017 = vperm.xlu0 %1016, %v919
        %v1018 = vpop.permute.xlu0 %1017
        %v1020 = vlaneseq
        %v1021 = vshrl.u32 %v1020, 7
        %v1022 = vsub.s32 1, %v1021
        %v1023 = vrot.slane %v926, %v1022
        %v1024 = vlaneseq
        %v1025 = vshrl.u32 %v1024, 7
        %v1026 = vsub.s32 5, %v1025
        %v1027 = vrot.slane %v926, %v1026
        %v1030 = vlaneseq
        %v1031 = vshrl.u32 %v1030, 7
        %v1032 = vsub.s32 1, %v1031
        %v1033 = vrot.slane %v1023, %v1032
        %v1034 = vlaneseq
        %v1035 = vshrl.u32 %v1034, 7
        %v1036 = vsub.s32 1, %v1035
        %v1037 = vrot.slane %v1027, %v1036
        %v1038 = vmax.f32 %v1018, %v1033
        %v1039 = vmax.f32 %v1018, %v1037
        %v1040 = vsub.f32 %v1014, %v1038
        %v1041 = vsub.f32 %v1015, %v1039
        %v1042 = vmax.f32 %v1040, 0.0
        %v1043 = vmax.f32 %v1041, 0.0
        %v1044 = vmul.f32 %v990, %v1042
        %v1045 = vmul.f32 %v991, %v1043
        %1047 = vset.pattern.permute.xlu0 2
        %1048 = vperm.xlu0 %1047, %v931
        %v1049 = vpop.permute.xlu0 %1048
        %v1052 = vlaneseq
        %v1053 = vshrl.u32 %v1052, 7
        %v1054 = vsub.s32 2, %v1053
        %v1055 = vrot.slane %v935, %v1054
        %v1056 = vlaneseq
        %v1057 = vshrl.u32 %v1056, 7
        %v1058 = vsub.s32 6, %v1057
        %v1059 = vrot.slane %v935, %v1058
        %v1062 = vlaneseq
        %v1063 = vshrl.u32 %v1062, 7
        %v1064 = vsub.s32 2, %v1063
        %v1065 = vrot.slane %v1055, %v1064
        %v1066 = vlaneseq
        %v1067 = vshrl.u32 %v1066, 7
        %v1068 = vsub.s32 2, %v1067
        %v1069 = vrot.slane %v1059, %v1068
        %v1070 = vadd.f32 %v1049, %v1065
        %v1071 = vadd.f32 %v1049, %v1069
        %v1072 = vsub.f32 %v1070, %v1044
        %v1073 = vsub.f32 %v1071, %v1045
        %v1074 = vmax.f32 %v939, %v955
        %v1075 = vmax.f32 %v939, %v959
        %v1076 = vmin.f32 %v965, %v981
        %v1077 = vmin.f32 %v965, %v985
        %v1078 = vsub.f32 %v1074, %v1076
        %v1079 = vsub.f32 %v1075, %v1077
        %v1080 = vmax.f32 %v994, %v1009
        %v1081 = vmax.f32 %v994, %v1013
        %v1082 = vmin.f32 %v1018, %v1033
        %v1083 = vmin.f32 %v1018, %v1037
        %v1084 = vsub.f32 %v1080, %v1082
        %v1085 = vsub.f32 %v1081, %v1083
        %v1086 = vmul.f32 %v1078, %v1084
        %v1087 = vmul.f32 %v1079, %v1085
        %v1088 = vadd.f32 %v1072, 1e-09
        %v1089 = vadd.f32 %v1073, 1e-09
        %v1090 = vrcp.pop %v1088
        %v1091 = vrcp.pop %v1089
        %v1092 = vadd.f32 %v1086, 1e-09
        %v1093 = vadd.f32 %v1087, 1e-09
        %v1094 = vrcp.pop %v1092
        %v1095 = vrcp.pop %v1093
        %v1096 = vsub.f32 %v1086, %v1072
        %v1097 = vsub.f32 %v1087, %v1073
        %v1098 = vmul.f32 %v1096, %v1094
        %v1099 = vmul.f32 %v1097, %v1095
        %v1100 = vmul.f32 %v1044, %v1090
        %v1101 = vmul.f32 %v1045, %v1091
        %v1102 = vsub.f32 %v1098, %v1100
        %v1103 = vsub.f32 %v1099, %v1101
        %v1104 = vmul.f32 %v677, 0.5
        %1106 = vrot.lane.b32.xlu0 %v1104, 126
        %v1107 = vpop.permute.xlu0 %1106
        %v1109 = vsub.f32 %v677, %v1107
        %v1110 = vadd.f32 %v677, %v1107
        %v1111 = vmul.f32 %v675, 0.5
        %v1113 = vrot.slane %v1111, 6
        %v1114 = vrot.slane %v1113, 4
        %v1116 = vsub.f32 %v675, %v1114
        %v1117 = vadd.f32 %v675, %v1114
        %1118 = vrot.lane.b32.xlu0 %v677, 127
        %v1119 = vpop.permute.xlu0 %1118
        %v1121 = vmul.f32 %v677, %v1119
        %v1122 = vrot.slane %v675, 5
        %v1123 = vrot.slane %v1122, 4
        %v1125 = vmul.f32 %v675, %v1123
        %1127 = vset.pattern.permute.xlu0 0
        %1128 = vperm.xlu0 %1127, %v1110
        %v1129 = vpop.permute.xlu0 %1128
        %v1132 = vlaneseq
        %v1133 = vshrl.u32 %v1132, 7
        %v1134 = vsub.s32 0, %v1133
        %v1135 = vrot.slane %v1117, %v1134
        %v1136 = vlaneseq
        %v1137 = vshrl.u32 %v1136, 7
        %v1138 = vsub.s32 4, %v1137
        %v1139 = vrot.slane %v1117, %v1138
        %v1142 = vlaneseq
        %v1143 = vshrl.u32 %v1142, 7
        %v1144 = vsub.s32 0, %v1143
        %v1145 = vrot.slane %v1135, %v1144
        %v1146 = vlaneseq
        %v1147 = vshrl.u32 %v1146, 7
        %v1148 = vsub.s32 0, %v1147
        %v1149 = vrot.slane %v1139, %v1148
        %v1150 = vmin.f32 %v1129, %v1145
        %v1151 = vmin.f32 %v1129, %v1149
        %1153 = vset.pattern.permute.xlu0 0
        %1154 = vperm.xlu0 %1153, %v1109
        %v1155 = vpop.permute.xlu0 %1154
        %v1158 = vlaneseq
        %v1159 = vshrl.u32 %v1158, 7
        %v1160 = vsub.s32 0, %v1159
        %v1161 = vrot.slane %v1116, %v1160
        %v1162 = vlaneseq
        %v1163 = vshrl.u32 %v1162, 7
        %v1164 = vsub.s32 4, %v1163
        %v1165 = vrot.slane %v1116, %v1164
        %v1168 = vlaneseq
        %v1169 = vshrl.u32 %v1168, 7
        %v1170 = vsub.s32 0, %v1169
        %v1171 = vrot.slane %v1161, %v1170
        %v1172 = vlaneseq
        %v1173 = vshrl.u32 %v1172, 7
        %v1174 = vsub.s32 0, %v1173
        %v1175 = vrot.slane %v1165, %v1174
        %v1176 = vmax.f32 %v1155, %v1171
        %v1177 = vmax.f32 %v1155, %v1175
        %v1178 = vsub.f32 %v1150, %v1176
        %v1179 = vsub.f32 %v1151, %v1177
        %v1180 = vmax.f32 %v1178, 0.0
        %v1181 = vmax.f32 %v1179, 0.0
        %1182 = vset.pattern.permute.xlu0 1
        %1183 = vperm.xlu0 %1182, %v1110
        %v1184 = vpop.permute.xlu0 %1183
        %v1186 = vlaneseq
        %v1187 = vshrl.u32 %v1186, 7
        %v1188 = vsub.s32 1, %v1187
        %v1189 = vrot.slane %v1117, %v1188
        %v1190 = vlaneseq
        %v1191 = vshrl.u32 %v1190, 7
        %v1192 = vsub.s32 5, %v1191
        %v1193 = vrot.slane %v1117, %v1192
        %v1196 = vlaneseq
        %v1197 = vshrl.u32 %v1196, 7
        %v1198 = vsub.s32 1, %v1197
        %v1199 = vrot.slane %v1189, %v1198
        %v1200 = vlaneseq
        %v1201 = vshrl.u32 %v1200, 7
        %v1202 = vsub.s32 1, %v1201
        %v1203 = vrot.slane %v1193, %v1202
        %v1204 = vmin.f32 %v1184, %v1199
        %v1205 = vmin.f32 %v1184, %v1203
        %1206 = vset.pattern.permute.xlu0 1
        %1207 = vperm.xlu0 %1206, %v1109
        %v1208 = vpop.permute.xlu0 %1207
        %v1210 = vlaneseq
        %v1211 = vshrl.u32 %v1210, 7
        %v1212 = vsub.s32 1, %v1211
        %v1213 = vrot.slane %v1116, %v1212
        %v1214 = vlaneseq
        %v1215 = vshrl.u32 %v1214, 7
        %v1216 = vsub.s32 5, %v1215
        %v1217 = vrot.slane %v1116, %v1216
        %v1220 = vlaneseq
        %v1221 = vshrl.u32 %v1220, 7
        %v1222 = vsub.s32 1, %v1221
        %v1223 = vrot.slane %v1213, %v1222
        %v1224 = vlaneseq
        %v1225 = vshrl.u32 %v1224, 7
        %v1226 = vsub.s32 1, %v1225
        %v1227 = vrot.slane %v1217, %v1226
        %v1228 = vmax.f32 %v1208, %v1223
        %v1229 = vmax.f32 %v1208, %v1227
        %v1230 = vsub.f32 %v1204, %v1228
        %v1231 = vsub.f32 %v1205, %v1229
        %v1232 = vmax.f32 %v1230, 0.0
        %v1233 = vmax.f32 %v1231, 0.0
        %v1234 = vmul.f32 %v1180, %v1232
        %v1235 = vmul.f32 %v1181, %v1233
        %1237 = vset.pattern.permute.xlu0 2
        %1238 = vperm.xlu0 %1237, %v1121
        %v1239 = vpop.permute.xlu0 %1238
        %v1242 = vlaneseq
        %v1243 = vshrl.u32 %v1242, 7
        %v1244 = vsub.s32 2, %v1243
        %v1245 = vrot.slane %v1125, %v1244
        %v1246 = vlaneseq
        %v1247 = vshrl.u32 %v1246, 7
        %v1248 = vsub.s32 6, %v1247
        %v1249 = vrot.slane %v1125, %v1248
        %v1252 = vlaneseq
        %v1253 = vshrl.u32 %v1252, 7
        %v1254 = vsub.s32 2, %v1253
        %v1255 = vrot.slane %v1245, %v1254
        %v1256 = vlaneseq
        %v1257 = vshrl.u32 %v1256, 7
        %v1258 = vsub.s32 2, %v1257
        %v1259 = vrot.slane %v1249, %v1258
        %v1260 = vadd.f32 %v1239, %v1255
        %v1261 = vadd.f32 %v1239, %v1259
        %v1262 = vsub.f32 %v1260, %v1234
        %v1263 = vsub.f32 %v1261, %v1235
        %v1264 = vmax.f32 %v1129, %v1145
        %v1265 = vmax.f32 %v1129, %v1149
        %v1266 = vmin.f32 %v1155, %v1171
        %v1267 = vmin.f32 %v1155, %v1175
        %v1268 = vsub.f32 %v1264, %v1266
        %v1269 = vsub.f32 %v1265, %v1267
        %v1270 = vmax.f32 %v1184, %v1199
        %v1271 = vmax.f32 %v1184, %v1203
        %v1272 = vmin.f32 %v1208, %v1223
        %v1273 = vmin.f32 %v1208, %v1227
        %v1274 = vsub.f32 %v1270, %v1272
        %v1275 = vsub.f32 %v1271, %v1273
        %v1276 = vmul.f32 %v1268, %v1274
        %v1277 = vmul.f32 %v1269, %v1275
        %v1278 = vadd.f32 %v1262, 1e-09
        %v1279 = vadd.f32 %v1263, 1e-09
        %v1280 = vrcp.pop %v1278
        %v1281 = vrcp.pop %v1279
        %v1282 = vadd.f32 %v1276, 1e-09
        %v1283 = vadd.f32 %v1277, 1e-09
        %v1284 = vrcp.pop %v1282
        %v1285 = vrcp.pop %v1283
        %v1286 = vsub.f32 %v1276, %v1262
        %v1287 = vsub.f32 %v1277, %v1263
        %v1288 = vmul.f32 %v1286, %v1284
        %v1289 = vmul.f32 %v1287, %v1285
        %v1290 = vmul.f32 %v1234, %v1280
        %v1291 = vmul.f32 %v1235, %v1281
        %v1292 = vsub.f32 %v1288, %v1290
        %v1293 = vsub.f32 %v1289, %v1291
        %v1294 = vsub.f32 1.0, %v579
        %1296 = vset.pattern.permute.xlu0 2
        %1297 = vperm.xlu0 %1296, %v1294
        %v1298 = vpop.permute.xlu0 %1297
        %v1300 = vmul.f32 %v1102, %v1298
        %v1301 = vmul.f32 %v1103, %v1298
        %v1302 = vadd.f32 %v1292, %v1300
        %v1303 = vadd.f32 %v1293, %v1301
        %v1304 = vmax.f32 %v1102, %v1302
        %v1305 = vmax.f32 %v1103, %v1303
        %v1306 = vadd.f32 %v912, %v1304
        %v1307 = vadd.f32 %v913, %v1305
        %1308 = vst [vmem:[%s423] sm:$0xff] %v1306
        %1309 = vst [vmem:[%s423 + $0x8] sm:$0xff] %v1307
        %s1310 = smul.u32 2, %s19
        %p1311 = scmp.lt.s32.totalorder %s1310, 3
        %s1312 = scalar_select %p1311, %s1310, 3
        %s1313 = smul.addr %s1312, 8
        %s1314 = scalar_lea.vmem %s8, %s1313
        // Predicated region
        $region99: #{_hoi_cost_matrix_jit.1} parent=89 // pred_check
          %p1315 = pneg %p225
        $region100: #{_hoi_cost_matrix_jit.1} parent=89 // pred_check_branch
          %1317 = sbr.rel (%p1315) target = $region102
        $region101: #{_hoi_cost_matrix_jit.1} parent=89 // pred_region
          %s1318 = smul.u32 2, %s19
        $region102: #{_hoi_cost_matrix_jit.1} parent=89 // pred_fallthru
          _
      $region90: #{_hoi_cost_matrix_jit.1} parent=5 // pred_fallthru
        _
      %p1319 = scmp.le.s32.totalorder 2, %s14
      // Predicated region
      $region103: #{_hoi_cost_matrix_jit.1} parent=5 // pred_check
        %p1320 = pneg %p1319
      $region104: #{_hoi_cost_matrix_jit.1} parent=5 // pred_check_branch
        %1322 = sbr.rel (%p1320) target = $region106
      $region105: #{_hoi_cost_matrix_jit.1} parent=5 // pred_region
        %s1323 = ssub.s32 %s14, 2
        // Predicated region
        $region107: #{_hoi_cost_matrix_jit.1} parent=105 // pred_check
          %p1324 = pneg %p231
        $region108: #{_hoi_cost_matrix_jit.1} parent=105 // pred_check_branch
          %1326 = sbr.rel (%p1324) target = $region110
        $region109: #{_hoi_cost_matrix_jit.1} parent=105 // pred_region
          %s1327 = smul.u32 2, %s20
          %p1328 = scmp.lt.s32.totalorder %s1327, 3
          %s1329 = scalar_select %p1328, %s1327, 3
          %s1330 = smul.addr %s1329, 8
          %s1331 = scalar_lea.vmem %s8, %s1330
        $region110: #{_hoi_cost_matrix_jit.1} parent=105 // pred_fallthru
          _
      $region106: #{_hoi_cost_matrix_jit.1} parent=5 // pred_fallthru
        _
    $region6: #{_hoi_cost_matrix_jit.1} parent=1 // loop_footer
      %s18 = sadd.s32 1, %s14
    $region7: #{_hoi_cost_matrix_jit.1} parent=1 // loop_footer_branch
      %13 = sbr.rel target = $region3
    $region8: #{_hoi_cost_matrix_jit.1} parent=1 // loop_exit
      _

</llo_original>
